<compile_context>
chip_gen: v7x
topology: tpu7x:2x2x1
jax: 0.10.0
libtpu: 0.0.40
codegen_flags: <defaults>
</compile_context>

<pallas_src>
import math
import functools

import jax
import jax.numpy as jnp
from jax.experimental import pallas as pl
from jax.experimental.pallas import tpu as pltpu


# ----------------------------------------------------------------------------
# Pallas kernel: one (batch, query-tile) step of the transformer block.
# ----------------------------------------------------------------------------
def _transformer_block_kernel(
    x_ref,      # (1, S, D)   f32  full-sequence input for this batch element
    an_ref,     # (1, D)      f32  attention_norm weight
    wq_ref,     # (D, D)      bf16 (pre-scaled by 1/sqrt(head_dim))
    wk_ref,     # (D, D)      bf16
    wv_ref,     # (D, D)      bf16
    wo_ref,     # (H, hd, D)  bf16 output proj, split per head
    fn_ref,     # (1, D)      f32  feed_forward_norm weight
    w1_ref,     # (D, F)      bf16 gate proj
    w3_ref,     # (D, F)      bf16 up proj
    w2_ref,     # (F, D)      bf16 down proj
    cos_ref,    # (S, hd)     f32  RoPE cos table
    sin_ref,    # (S, hd)     f32  RoPE sin table
    o_ref,      # (1, tq, D)  output tile
    *,
    n_heads: int,
    tq: int,
    eps: float,
):
    S = x_ref.shape[1]
    D = x_ref.shape[2]
    hd = D // n_heads
    half = hd // 2

    qi = pl.program_id(1)
    q_start = pl.multiple_of(qi * tq, tq)

    # ---- load inputs (residual path stays f32) ---------------------------
    x_full = x_ref[0].astype(jnp.float32)                         # (S, D)
    x_q = x_ref[0, pl.ds(q_start, tq), :].astype(jnp.float32)     # (tq, D)

    def rms_norm(v, w):                                           # f32 RMSNorm
        var = jnp.mean(v * v, axis=-1, keepdims=True)
        return v * jax.lax.rsqrt(var + eps) * w

    an_w = an_ref[0].astype(jnp.float32)                          # (D,)
    hn_full = rms_norm(x_full, an_w).astype(jnp.bfloat16)         # (S, D)  -> K/V
    hn_q = rms_norm(x_q, an_w).astype(jnp.bfloat16)               # (tq, D) -> Q

    # ---- full-width projections (MXU workhorses, contraction = D) --------
    q = jnp.dot(hn_q, wq_ref[...], preferred_element_type=jnp.float32)    # (tq, D)
    k = jnp.dot(hn_full, wk_ref[...], preferred_element_type=jnp.float32)  # (S, D)
    v = jnp.dot(hn_full, wv_ref[...], preferred_element_type=jnp.float32)  # (S, D)

    cos_full = cos_ref[...]                                       # (S, hd)
    sin_full = sin_ref[...]
    cos_q = cos_ref[pl.ds(q_start, tq), :]                        # (tq, hd)
    sin_q = sin_ref[pl.ds(q_start, tq), :]

    def rope(t, c, s):                                            # rotate-half RoPE
        t1 = t[:, :half]
        t2 = t[:, half:]
        rot = jnp.concatenate([-t2, t1], axis=-1)
        return t * c + rot * s

    # causal mask bias with global row offset for this query tile
    rows = jax.lax.broadcasted_iota(jnp.int32, (tq, S), 0) + q_start
    cols = jax.lax.broadcasted_iota(jnp.int32, (tq, S), 1)
    mask_bias = jnp.where(rows >= cols, jnp.float32(0.0), jnp.float32(-1e30))

    # ---- attention: static head loop, contexts folded straight into acc ---
    attn_acc = jnp.zeros((tq, D), jnp.float32)
    for h in range(n_heads):
        sl = slice(h * hd, (h + 1) * hd)
        qh = rope(q[:, sl], cos_q, sin_q).astype(jnp.bfloat16)        # (tq, hd)
        kh = rope(k[:, sl], cos_full, sin_full).astype(jnp.bfloat16)  # (S, hd)
        vh = v[:, sl].astype(jnp.bfloat16)                            # (S, hd)

        # scores: contract head dim of q with head dim of k (no explicit .T)
        s = jax.lax.dot_general(
            qh, kh, (((1,), (1,)), ((), ())),
            preferred_element_type=jnp.float32)                       # (tq, S)
        s = s + mask_bias

        m = jnp.max(s, axis=-1, keepdims=True)                        # f32 stats
        p = jnp.exp(s - m)
        l = jnp.sum(p, axis=-1, keepdims=True)

        ctx = jnp.dot(p.astype(jnp.bfloat16), vh,
                      preferred_element_type=jnp.float32)             # (tq, hd)
        ctx = ctx * pl.reciprocal(l, approx=True)

        attn_acc = attn_acc + jnp.dot(ctx.astype(jnp.bfloat16), wo_ref[h],
                                      preferred_element_type=jnp.float32)

    # dropout p = 0.0 -> Identity (module default)
    h1 = x_q + attn_acc                                           # first residual, f32

    # ---- feed-forward (SwiGLU) --------------------------------------------
    fn_w = fn_ref[0].astype(jnp.float32)
    hn2 = rms_norm(h1, fn_w).astype(jnp.bfloat16)
    g = jnp.dot(hn2, w1_ref[...], preferred_element_type=jnp.float32)
    u = jnp.dot(hn2, w3_ref[...], preferred_element_type=jnp.float32)
    act = (g * jax.nn.sigmoid(g) * u).astype(jnp.bfloat16)
    ff = jnp.dot(act, w2_ref[...], preferred_element_type=jnp.float32)

    o_ref[0] = (h1 + ff).astype(o_ref.dtype)                      # second residual


# ----------------------------------------------------------------------------
# Wrapper: weight prep (bf16, scale folding, per-head wo split), grid, specs.
# ----------------------------------------------------------------------------
def transformer_block(x, params, cos, sin, *, n_heads, eps=1e-5, q_tile=None):
    B, S, D = x.shape
    F = params["w1"].shape[1]
    hd = D // n_heads
    assert D % n_heads == 0 and hd % 2 == 0

    if q_tile is None:
        q_tile = min(S, 256)        # 128 is preferable on v5e at realistic sizes
    tq = q_tile
    assert S % tq == 0 and (tq == S or tq % 8 == 0)

    scale = 1.0 / math.sqrt(hd)
    # bf16 weights (halve DMA + run the MXU at bf16 peak); fold 1/sqrt(hd) into wq.
    wq = (params["wq"] * scale).astype(jnp.bfloat16)
    wk = params["wk"].astype(jnp.bfloat16)
    wv = params["wv"].astype(jnp.bfloat16)
    wo = params["wo"].reshape(n_heads, hd, D).astype(jnp.bfloat16)
    w1 = params["w1"].astype(jnp.bfloat16)
    w3 = params["w3"].astype(jnp.bfloat16)
    w2 = params["w2"].astype(jnp.bfloat16)

    def inv(shape):  # grid-invariant block (resident across all steps)
        return pl.BlockSpec(shape, lambda b, qi, _s=shape: (0,) * len(_s))

    kernel = functools.partial(
        _transformer_block_kernel, n_heads=n_heads, tq=tq, eps=eps)

    return pl.pallas_call(
        kernel,
        out_shape=jax.ShapeDtypeStruct((B, S, D), x.dtype),
        grid=(B, S // tq),
        in_specs=[
            pl.BlockSpec((1, S, D), lambda b, qi: (b, 0, 0)),   # x (full seq per batch)
            inv((1, D)),                                        # attention_norm w
            inv((D, D)),                                        # wq (scaled)
            inv((D, D)),                                        # wk
            inv((D, D)),                                        # wv
            inv((n_heads, hd, D)),                              # wo (per-head split)
            inv((1, D)),                                        # feed_forward_norm w
            inv((D, F)),                                        # w1 (gate)
            inv((D, F)),                                        # w3 (up)
            inv((F, D)),                                        # w2 (down)
            inv((S, hd)),                                       # RoPE cos
            inv((S, hd)),                                       # RoPE sin
        ],
        out_specs=pl.BlockSpec((1, tq, D), lambda b, qi: (b, qi, 0)),
        compiler_params=pltpu.CompilerParams(
            dimension_semantics=("parallel", "parallel"),
            vmem_limit_bytes=48 * 1024 * 1024,
        ),
    )(
        x,
        params["attn_norm_w"],
        wq, wk, wv, wo,
        params["ffn_norm_w"],
        w1, w3, w2,
        cos, sin,
    )


# ----------------------------------------------------------------------------
# Pure-JAX f32 reference (same math) for the correctness check.
# ----------------------------------------------------------------------------
def reference_block(x, params, cos, sin, *, n_heads, eps=1e-5):
    B, S, D = x.shape
    hd = D // n_heads
    scale = 1.0 / math.sqrt(hd)

    def rms_norm(v, w):
        var = jnp.mean(v * v, axis=-1, keepdims=True)
        return v * jax.lax.rsqrt(var + eps) * w

    def rope(t):  # t: (B, S, n_heads, hd)
        t1, t2 = t[..., : hd // 2], t[..., hd // 2:]
        rot = jnp.concatenate([-t2, t1], axis=-1)
        return t * cos[None, :, None, :] + rot * sin[None, :, None, :]

    hn = rms_norm(x, params["attn_norm_w"][0])
    q = (hn @ params["wq"]).reshape(B, S, n_heads, hd)
    k = (hn @ params["wk"]).reshape(B, S, n_heads, hd)
    v = (hn @ params["wv"]).reshape(B, S, n_heads, hd)
    q, k = rope(q), rope(k)
    s = jnp.einsum("bqhd,bkhd->bhqk", q, k) * scale
    causal = jnp.tril(jnp.ones((S, S), bool))
    s = jnp.where(causal[None, None], s, -jnp.inf)
    p = jax.nn.softmax(s, axis=-1)
    attn = jnp.einsum("bhqk,bkhd->bqhd", p, v).reshape(B, S, D) @ params["wo"]
    h1 = x + attn

    hn2 = rms_norm(h1, params["ffn_norm_w"][0])
    g = hn2 @ params["w1"]
    u = hn2 @ params["w3"]
    ff = (jax.nn.silu(g) * u) @ params["w2"]
    return h1 + ff


# ----------------------------------------------------------------------------
if __name__ == "__main__":
    B, S, D = 2, 8, 128
    N_HEADS = 4
    HD = D // N_HEADS
    HIDDEN = 256
    THETA = 10000.0

    key = jax.random.PRNGKey(0)
    ks = jax.random.split(key, 8)

    def init(k, shape):
        return (0.02 * jax.random.normal(k, shape)).astype(jnp.float32)

    params = {
        "attn_norm_w": jnp.ones((1, D), jnp.float32),
        "ffn_norm_w": jnp.ones((1, D), jnp.float32),
        "wq": init(ks[0], (D, D)),
        "wk": init(ks[1], (D, D)),
        "wv": init(ks[2], (D, D)),
        "wo": init(ks[3], (D, D)),
        "w1": init(ks[4], (D, HIDDEN)),
        "w3": init(ks[5], (D, HIDDEN)),
        "w2": init(ks[6], (HIDDEN, D)),
    }

    # RoPE tables (rotate-half convention), shape (S, head_dim).
    inv_freq = 1.0 / (THETA ** (jnp.arange(0, HD, 2, dtype=jnp.float32) / HD))
    angles = jnp.arange(S, dtype=jnp.float32)[:, None] * inv_freq[None, :]   # (S, hd/2)
    cos = jnp.concatenate([jnp.cos(angles), jnp.cos(angles)], axis=-1)        # (S, hd)
    sin = jnp.concatenate([jnp.sin(angles), jnp.sin(angles)], axis=-1)        # (S, hd)

    x = jax.random.normal(ks[7], (B, S, D), jnp.float32)

    out = transformer_block(x, params, cos, sin, n_heads=N_HEADS)
    out = jax.block_until_ready(out)

    ref = reference_block(x, params, cos, sin, n_heads=N_HEADS)
    assert out.shape == (B, S, D)
    # bf16 matmul operands (f32 accumulation) -> compare at bf16-level tolerance.
    assert jnp.allclose(out, ref, atol=2e-2, rtol=2e-2), "mismatch vs pure-JAX reference"

    # TODO(synk): dropout > 0.0 and the KV-cache / document-masking kwargs of the
    # attention module are not modeled (module default is dropout=0 Identity).
    print("KERNEL_OK")
</pallas_src>

<mosaic_0001>
module attributes {stable_mosaic.version = 11 : i64} {
  func.func @_transformer_block_kernel(%arg0: i32, %arg1: i32, %arg2: memref<1x8x128xf32, #tpu.memory_space<vmem>>, %arg3: memref<1x128xf32, #tpu.memory_space<vmem>>, %arg4: memref<128x128xbf16, #tpu.memory_space<vmem>>, %arg5: memref<128x128xbf16, #tpu.memory_space<vmem>>, %arg6: memref<128x128xbf16, #tpu.memory_space<vmem>>, %arg7: memref<4x32x128xbf16, #tpu.memory_space<vmem>>, %arg8: memref<1x128xf32, #tpu.memory_space<vmem>>, %arg9: memref<128x256xbf16, #tpu.memory_space<vmem>>, %arg10: memref<128x256xbf16, #tpu.memory_space<vmem>>, %arg11: memref<256x128xbf16, #tpu.memory_space<vmem>>, %arg12: memref<8x32xf32, #tpu.memory_space<vmem>>, %arg13: memref<8x32xf32, #tpu.memory_space<vmem>>, %arg14: memref<1x8x128xf32, #tpu.memory_space<vmem>>) attributes {dimension_semantics = [#tpu.dimension_semantics<parallel>, #tpu.dimension_semantics<parallel>], iteration_bounds = array<i64: 2, 1>, scalar_prefetch = 0 : i64, scratch_operands = 0 : i64, tpu.core_type = #tpu.core_type<tc>, window_params = [{transform_indices = @transform_0, window_bounds = array<i64: 1, 8, 128>}, {pipeline_mode = #tpu.pipeline_mode<synchronous>, transform_indices = @transform_1, window_bounds = array<i64: 1, 128>}, {pipeline_mode = #tpu.pipeline_mode<synchronous>, transform_indices = @transform_2, window_bounds = array<i64: 128, 128>}, {pipeline_mode = #tpu.pipeline_mode<synchronous>, transform_indices = @transform_3, window_bounds = array<i64: 128, 128>}, {pipeline_mode = #tpu.pipeline_mode<synchronous>, transform_indices = @transform_4, window_bounds = array<i64: 128, 128>}, {pipeline_mode = #tpu.pipeline_mode<synchronous>, transform_indices = @transform_5, window_bounds = array<i64: 4, 32, 128>}, {pipeline_mode = #tpu.pipeline_mode<synchronous>, transform_indices = @transform_6, window_bounds = array<i64: 1, 128>}, {pipeline_mode = #tpu.pipeline_mode<synchronous>, transform_indices = @transform_7, window_bounds = array<i64: 128, 256>}, {pipeline_mode = #tpu.pipeline_mode<synchronous>, transform_indices = @transform_8, window_bounds = array<i64: 128, 256>}, {pipeline_mode = #tpu.pipeline_mode<synchronous>, transform_indices = @transform_9, window_bounds = array<i64: 256, 128>}, {pipeline_mode = #tpu.pipeline_mode<synchronous>, transform_indices = @transform_10, window_bounds = array<i64: 8, 32>}, {pipeline_mode = #tpu.pipeline_mode<synchronous>, transform_indices = @transform_11, window_bounds = array<i64: 8, 32>}, {transform_indices = @transform_12, window_bounds = array<i64: 1, 8, 128>}]} {
    %c8_i32 = arith.constant 8 : i32
    %0 = arith.muli %arg1, %c8_i32 : i32
    %1 = tpu.assume_multiple %0, 8 : i32
    %c0 = arith.constant 0 : index
    %c0_0 = arith.constant 0 : index
    %c0_1 = arith.constant 0 : index
    %2 = vector.load %arg2[%c0, %c0_0, %c0_1] : memref<1x8x128xf32, #tpu.memory_space<vmem>>, vector<1x8x128xf32>
    %3 = vector.shape_cast %2 : vector<1x8x128xf32> to vector<8x128xf32>
    %c0_2 = arith.constant 0 : index
    %4 = arith.index_cast %1 : i32 to index
    %c0_3 = arith.constant 0 : index
    %5 = vector.load %arg2[%c0_2, %4, %c0_3] : memref<1x8x128xf32, #tpu.memory_space<vmem>>, vector<1x8x128xf32>
    %6 = vector.shape_cast %5 : vector<1x8x128xf32> to vector<8x128xf32>
    %c0_4 = arith.constant 0 : index
    %c0_5 = arith.constant 0 : index
    %7 = vector.load %arg3[%c0_4, %c0_5] : memref<1x128xf32, #tpu.memory_space<vmem>>, vector<1x128xf32>
    %8 = vector.shape_cast %7 : vector<1x128xf32> to vector<128xf32>
    %9 = arith.mulf %3, %3 : vector<8x128xf32>
    %cst = arith.constant dense<0.000000e+00> : vector<8xf32>
    %10 = vector.multi_reduction <add>, %9, %cst [1] : vector<8x128xf32> to vector<8xf32>
    %11 = vector.shape_cast %10 : vector<8xf32> to vector<8x1xf32>
    %cst_6 = arith.constant 1.280000e+02 : f32
    %12 = vector.broadcast %cst_6 : f32 to vector<8x1xf32>
    %13 = arith.divf %11, %12 : vector<8x1xf32>
    %cst_7 = arith.constant 9.99999974E-6 : f32
    %14 = vector.broadcast %cst_7 : f32 to vector<8x1xf32>
    %15 = arith.addf %13, %14 : vector<8x1xf32>
    %16 = math.rsqrt %15 : vector<8x1xf32>
    %17 = vector.broadcast %16 : vector<8x1xf32> to vector<8x128xf32>
    %18 = arith.mulf %3, %17 : vector<8x128xf32>
    %19 = vector.shape_cast %8 : vector<128xf32> to vector<1x128xf32>
    %20 = vector.broadcast %19 : vector<1x128xf32> to vector<8x128xf32>
    %21 = arith.mulf %18, %20 : vector<8x128xf32>
    %22 = arith.truncf %21 : vector<8x128xf32> to vector<8x128xbf16>
    %23 = arith.mulf %6, %6 : vector<8x128xf32>
    %cst_8 = arith.constant dense<0.000000e+00> : vector<8xf32>
    %24 = vector.multi_reduction <add>, %23, %cst_8 [1] : vector<8x128xf32> to vector<8xf32>
    %25 = vector.shape_cast %24 : vector<8xf32> to vector<8x1xf32>
    %cst_9 = arith.constant 1.280000e+02 : f32
    %26 = vector.broadcast %cst_9 : f32 to vector<8x1xf32>
    %27 = arith.divf %25, %26 : vector<8x1xf32>
    %cst_10 = arith.constant 9.99999974E-6 : f32
    %28 = vector.broadcast %cst_10 : f32 to vector<8x1xf32>
    %29 = arith.addf %27, %28 : vector<8x1xf32>
    %30 = math.rsqrt %29 : vector<8x1xf32>
    %31 = vector.broadcast %30 : vector<8x1xf32> to vector<8x128xf32>
    %32 = arith.mulf %6, %31 : vector<8x128xf32>
    %33 = vector.shape_cast %8 : vector<128xf32> to vector<1x128xf32>
    %34 = vector.broadcast %33 : vector<1x128xf32> to vector<8x128xf32>
    %35 = arith.mulf %32, %34 : vector<8x128xf32>
    %36 = arith.truncf %35 : vector<8x128xf32> to vector<8x128xbf16>
    %c0_11 = arith.constant 0 : index
    %c0_12 = arith.constant 0 : index
    %37 = vector.load %arg4[%c0_11, %c0_12] : memref<128x128xbf16, #tpu.memory_space<vmem>>, vector<128x128xbf16>
    %cst_13 = arith.constant dense<0.000000e+00> : vector<8x128xf32>
    %38 = tpu.matmul %36, %37, %cst_13 {dimension_numbers = #tpu.dot_dimension_numbers<[1], [0], [0], [1], [0, 0, 1, 1], [], []>} : vector<8x128xbf16>, vector<128x128xbf16>, vector<8x128xf32> -> vector<8x128xf32>
    %c0_14 = arith.constant 0 : index
    %c0_15 = arith.constant 0 : index
    %39 = vector.load %arg5[%c0_14, %c0_15] : memref<128x128xbf16, #tpu.memory_space<vmem>>, vector<128x128xbf16>
    %cst_16 = arith.constant dense<0.000000e+00> : vector<8x128xf32>
    %40 = tpu.matmul %22, %39, %cst_16 {dimension_numbers = #tpu.dot_dimension_numbers<[1], [0], [0], [1], [0, 0, 1, 1], [], []>} : vector<8x128xbf16>, vector<128x128xbf16>, vector<8x128xf32> -> vector<8x128xf32>
    %c0_17 = arith.constant 0 : index
    %c0_18 = arith.constant 0 : index
    %41 = vector.load %arg6[%c0_17, %c0_18] : memref<128x128xbf16, #tpu.memory_space<vmem>>, vector<128x128xbf16>
    %cst_19 = arith.constant dense<0.000000e+00> : vector<8x128xf32>
    %42 = tpu.matmul %22, %41, %cst_19 {dimension_numbers = #tpu.dot_dimension_numbers<[1], [0], [0], [1], [0, 0, 1, 1], [], []>} : vector<8x128xbf16>, vector<128x128xbf16>, vector<8x128xf32> -> vector<8x128xf32>
    %c0_20 = arith.constant 0 : index
    %c0_21 = arith.constant 0 : index
    %43 = vector.load %arg12[%c0_20, %c0_21] : memref<8x32xf32, #tpu.memory_space<vmem>>, vector<8x32xf32>
    %c0_22 = arith.constant 0 : index
    %c0_23 = arith.constant 0 : index
    %44 = vector.load %arg13[%c0_22, %c0_23] : memref<8x32xf32, #tpu.memory_space<vmem>>, vector<8x32xf32>
    %45 = arith.index_cast %1 : i32 to index
    %c0_24 = arith.constant 0 : index
    %46 = vector.load %arg12[%45, %c0_24] : memref<8x32xf32, #tpu.memory_space<vmem>>, vector<8x32xf32>
    %47 = arith.index_cast %1 : i32 to index
    %c0_25 = arith.constant 0 : index
    %48 = vector.load %arg13[%47, %c0_25] : memref<8x32xf32, #tpu.memory_space<vmem>>, vector<8x32xf32>
    %49 = tpu.iota {dimensions = array<i32: 0>} : vector<8x8xi32>
    %50 = vector.broadcast %1 : i32 to vector<8x8xi32>
    %51 = arith.addi %49, %50 : vector<8x8xi32>
    %52 = tpu.iota {dimensions = array<i32: 1>} : vector<8x8xi32>
    %53 = arith.cmpi sge, %51, %52 : vector<8x8xi32>
    %cst_26 = arith.constant 0.000000e+00 : f32
    %cst_27 = arith.constant -1.000000e+30 : f32
    %54 = vector.broadcast %cst_26 : f32 to vector<8x8xf32>
    %55 = vector.broadcast %cst_27 : f32 to vector<8x8xf32>
    %56 = arith.select %53, %54, %55 : vector<8x8xi1>, vector<8x8xf32>
    %cst_28 = arith.constant 0.000000e+00 : f32
    %57 = vector.broadcast %cst_28 : f32 to vector<8x128xf32>
    %58 = vector.extract_strided_slice %38 {offsets = [0, 0], sizes = [8, 32], strides = [1, 1]} : vector<8x128xf32> to vector<8x32xf32>
    %59 = vector.extract_strided_slice %58 {offsets = [0, 0], sizes = [8, 16], strides = [1, 1]} : vector<8x32xf32> to vector<8x16xf32>
    %60 = vector.extract_strided_slice %58 {offsets = [0, 16], sizes = [8, 16], strides = [1, 1]} : vector<8x32xf32> to vector<8x16xf32>
    %cst_29 = arith.constant 0.000000e+00 : f32
    %61 = vector.broadcast %cst_29 : f32 to vector<8x16xf32>
    %62 = arith.subf %61, %60 : vector<8x16xf32>
    %63 = tpu.concatenate %62, %59 in 1 : vector<8x16xf32>, vector<8x16xf32> -> vector<8x32xf32>
    %64 = arith.mulf %58, %46 : vector<8x32xf32>
    %65 = arith.mulf %63, %48 : vector<8x32xf32>
    %66 = arith.addf %64, %65 : vector<8x32xf32>
    %67 = arith.truncf %66 : vector<8x32xf32> to vector<8x32xbf16>
    %68 = vector.extract_strided_slice %40 {offsets = [0, 0], sizes = [8, 32], strides = [1, 1]} : vector<8x128xf32> to vector<8x32xf32>
    %69 = vector.extract_strided_slice %68 {offsets = [0, 0], sizes = [8, 16], strides = [1, 1]} : vector<8x32xf32> to vector<8x16xf32>
    %70 = vector.extract_strided_slice %68 {offsets = [0, 16], sizes = [8, 16], strides = [1, 1]} : vector<8x32xf32> to vector<8x16xf32>
    %cst_30 = arith.constant 0.000000e+00 : f32
    %71 = vector.broadcast %cst_30 : f32 to vector<8x16xf32>
    %72 = arith.subf %71, %70 : vector<8x16xf32>
    %73 = tpu.concatenate %72, %69 in 1 : vector<8x16xf32>, vector<8x16xf32> -> vector<8x32xf32>
    %74 = arith.mulf %68, %43 : vector<8x32xf32>
    %75 = arith.mulf %73, %44 : vector<8x32xf32>
    %76 = arith.addf %74, %75 : vector<8x32xf32>
    %77 = arith.truncf %76 : vector<8x32xf32> to vector<8x32xbf16>
    %78 = vector.extract_strided_slice %42 {offsets = [0, 0], sizes = [8, 32], strides = [1, 1]} : vector<8x128xf32> to vector<8x32xf32>
    %79 = arith.truncf %78 : vector<8x32xf32> to vector<8x32xbf16>
    %cst_31 = arith.constant dense<0.000000e+00> : vector<8x8xf32>
    %80 = tpu.matmul %67, %77, %cst_31 {dimension_numbers = #tpu.dot_dimension_numbers<[1], [1], [0], [0], [0, 0, 1, 0], [], []>} : vector<8x32xbf16>, vector<8x32xbf16>, vector<8x8xf32> -> vector<8x8xf32>
    %81 = arith.addf %80, %56 : vector<8x8xf32>
    %cst_32 = arith.constant dense<0xFF800000> : vector<8xf32>
    %82 = vector.multi_reduction <maximumf>, %81, %cst_32 [1] : vector<8x8xf32> to vector<8xf32>
    %83 = vector.shape_cast %82 : vector<8xf32> to vector<8x1xf32>
    %84 = vector.broadcast %83 : vector<8x1xf32> to vector<8x8xf32>
    %85 = arith.subf %81, %84 : vector<8x8xf32>
    %86 = math.exp %85 : vector<8x8xf32>
    %cst_33 = arith.constant dense<0.000000e+00> : vector<8xf32>
    %87 = vector.multi_reduction <add>, %86, %cst_33 [1] : vector<8x8xf32> to vector<8xf32>
    %88 = vector.shape_cast %87 : vector<8xf32> to vector<8x1xf32>
    %89 = arith.truncf %86 : vector<8x8xf32> to vector<8x8xbf16>
    %cst_34 = arith.constant dense<0.000000e+00> : vector<8x32xf32>
    %90 = tpu.matmul %89, %79, %cst_34 {dimension_numbers = #tpu.dot_dimension_numbers<[1], [0], [0], [1], [0, 0, 1, 1], [], []>} : vector<8x8xbf16>, vector<8x32xbf16>, vector<8x32xf32> -> vector<8x32xf32>
    %91 = tpu.reciprocal %88 {approx = true} : vector<8x1xf32> -> vector<8x1xf32>
    %92 = vector.broadcast %91 : vector<8x1xf32> to vector<8x32xf32>
    %93 = arith.mulf %90, %92 : vector<8x32xf32>
    %94 = arith.truncf %93 : vector<8x32xf32> to vector<8x32xbf16>
    %c0_35 = arith.constant 0 : index
    %c0_36 = arith.constant 0 : index
    %c0_37 = arith.constant 0 : index
    %95 = vector.load %arg7[%c0_35, %c0_36, %c0_37] : memref<4x32x128xbf16, #tpu.memory_space<vmem>>, vector<1x32x128xbf16>
    %96 = vector.shape_cast %95 : vector<1x32x128xbf16> to vector<32x128xbf16>
    %cst_38 = arith.constant dense<0.000000e+00> : vector<8x128xf32>
    %97 = tpu.matmul %94, %96, %cst_38 {dimension_numbers = #tpu.dot_dimension_numbers<[1], [0], [0], [1], [0, 0, 1, 1], [], []>} : vector<8x32xbf16>, vector<32x128xbf16>, vector<8x128xf32> -> vector<8x128xf32>
    %98 = arith.addf %57, %97 : vector<8x128xf32>
    %99 = vector.extract_strided_slice %38 {offsets = [0, 32], sizes = [8, 32], strides = [1, 1]} : vector<8x128xf32> to vector<8x32xf32>
    %100 = vector.extract_strided_slice %99 {offsets = [0, 0], sizes = [8, 16], strides = [1, 1]} : vector<8x32xf32> to vector<8x16xf32>
    %101 = vector.extract_strided_slice %99 {offsets = [0, 16], sizes = [8, 16], strides = [1, 1]} : vector<8x32xf32> to vector<8x16xf32>
    %cst_39 = arith.constant 0.000000e+00 : f32
    %102 = vector.broadcast %cst_39 : f32 to vector<8x16xf32>
    %103 = arith.subf %102, %101 : vector<8x16xf32>
    %104 = tpu.concatenate %103, %100 in 1 : vector<8x16xf32>, vector<8x16xf32> -> vector<8x32xf32>
    %105 = arith.mulf %99, %46 : vector<8x32xf32>
    %106 = arith.mulf %104, %48 : vector<8x32xf32>
    %107 = arith.addf %105, %106 : vector<8x32xf32>
    %108 = arith.truncf %107 : vector<8x32xf32> to vector<8x32xbf16>
    %109 = vector.extract_strided_slice %40 {offsets = [0, 32], sizes = [8, 32], strides = [1, 1]} : vector<8x128xf32> to vector<8x32xf32>
    %110 = vector.extract_strided_slice %109 {offsets = [0, 0], sizes = [8, 16], strides = [1, 1]} : vector<8x32xf32> to vector<8x16xf32>
    %111 = vector.extract_strided_slice %109 {offsets = [0, 16], sizes = [8, 16], strides = [1, 1]} : vector<8x32xf32> to vector<8x16xf32>
    %cst_40 = arith.constant 0.000000e+00 : f32
    %112 = vector.broadcast %cst_40 : f32 to vector<8x16xf32>
    %113 = arith.subf %112, %111 : vector<8x16xf32>
    %114 = tpu.concatenate %113, %110 in 1 : vector<8x16xf32>, vector<8x16xf32> -> vector<8x32xf32>
    %115 = arith.mulf %109, %43 : vector<8x32xf32>
    %116 = arith.mulf %114, %44 : vector<8x32xf32>
    %117 = arith.addf %115, %116 : vector<8x32xf32>
    %118 = arith.truncf %117 : vector<8x32xf32> to vector<8x32xbf16>
    %119 = vector.extract_strided_slice %42 {offsets = [0, 32], sizes = [8, 32], strides = [1, 1]} : vector<8x128xf32> to vector<8x32xf32>
    %120 = arith.truncf %119 : vector<8x32xf32> to vector<8x32xbf16>
    %cst_41 = arith.constant dense<0.000000e+00> : vector<8x8xf32>
    %121 = tpu.matmul %108, %118, %cst_41 {dimension_numbers = #tpu.dot_dimension_numbers<[1], [1], [0], [0], [0, 0, 1, 0], [], []>} : vector<8x32xbf16>, vector<8x32xbf16>, vector<8x8xf32> -> vector<8x8xf32>
    %122 = arith.addf %121, %56 : vector<8x8xf32>
    %cst_42 = arith.constant dense<0xFF800000> : vector<8xf32>
    %123 = vector.multi_reduction <maximumf>, %122, %cst_42 [1] : vector<8x8xf32> to vector<8xf32>
    %124 = vector.shape_cast %123 : vector<8xf32> to vector<8x1xf32>
    %125 = vector.broadcast %124 : vector<8x1xf32> to vector<8x8xf32>
    %126 = arith.subf %122, %125 : vector<8x8xf32>
    %127 = math.exp %126 : vector<8x8xf32>
    %cst_43 = arith.constant dense<0.000000e+00> : vector<8xf32>
    %128 = vector.multi_reduction <add>, %127, %cst_43 [1] : vector<8x8xf32> to vector<8xf32>
    %129 = vector.shape_cast %128 : vector<8xf32> to vector<8x1xf32>
    %130 = arith.truncf %127 : vector<8x8xf32> to vector<8x8xbf16>
    %cst_44 = arith.constant dense<0.000000e+00> : vector<8x32xf32>
    %131 = tpu.matmul %130, %120, %cst_44 {dimension_numbers = #tpu.dot_dimension_numbers<[1], [0], [0], [1], [0, 0, 1, 1], [], []>} : vector<8x8xbf16>, vector<8x32xbf16>, vector<8x32xf32> -> vector<8x32xf32>
    %132 = tpu.reciprocal %129 {approx = true} : vector<8x1xf32> -> vector<8x1xf32>
    %133 = vector.broadcast %132 : vector<8x1xf32> to vector<8x32xf32>
    %134 = arith.mulf %131, %133 : vector<8x32xf32>
    %135 = arith.truncf %134 : vector<8x32xf32> to vector<8x32xbf16>
    %c1 = arith.constant 1 : index
    %c0_45 = arith.constant 0 : index
    %c0_46 = arith.constant 0 : index
    %136 = vector.load %arg7[%c1, %c0_45, %c0_46] : memref<4x32x128xbf16, #tpu.memory_space<vmem>>, vector<1x32x128xbf16>
    %137 = vector.shape_cast %136 : vector<1x32x128xbf16> to vector<32x128xbf16>
    %cst_47 = arith.constant dense<0.000000e+00> : vector<8x128xf32>
    %138 = tpu.matmul %135, %137, %cst_47 {dimension_numbers = #tpu.dot_dimension_numbers<[1], [0], [0], [1], [0, 0, 1, 1], [], []>} : vector<8x32xbf16>, vector<32x128xbf16>, vector<8x128xf32> -> vector<8x128xf32>
    %139 = arith.addf %98, %138 : vector<8x128xf32>
    %140 = vector.extract_strided_slice %38 {offsets = [0, 64], sizes = [8, 32], strides = [1, 1]} : vector<8x128xf32> to vector<8x32xf32>
    %141 = vector.extract_strided_slice %140 {offsets = [0, 0], sizes = [8, 16], strides = [1, 1]} : vector<8x32xf32> to vector<8x16xf32>
    %142 = vector.extract_strided_slice %140 {offsets = [0, 16], sizes = [8, 16], strides = [1, 1]} : vector<8x32xf32> to vector<8x16xf32>
    %cst_48 = arith.constant 0.000000e+00 : f32
    %143 = vector.broadcast %cst_48 : f32 to vector<8x16xf32>
    %144 = arith.subf %143, %142 : vector<8x16xf32>
    %145 = tpu.concatenate %144, %141 in 1 : vector<8x16xf32>, vector<8x16xf32> -> vector<8x32xf32>
    %146 = arith.mulf %140, %46 : vector<8x32xf32>
    %147 = arith.mulf %145, %48 : vector<8x32xf32>
    %148 = arith.addf %146, %147 : vector<8x32xf32>
    %149 = arith.truncf %148 : vector<8x32xf32> to vector<8x32xbf16>
    %150 = vector.extract_strided_slice %40 {offsets = [0, 64], sizes = [8, 32], strides = [1, 1]} : vector<8x128xf32> to vector<8x32xf32>
    %151 = vector.extract_strided_slice %150 {offsets = [0, 0], sizes = [8, 16], strides = [1, 1]} : vector<8x32xf32> to vector<8x16xf32>
    %152 = vector.extract_strided_slice %150 {offsets = [0, 16], sizes = [8, 16], strides = [1, 1]} : vector<8x32xf32> to vector<8x16xf32>
    %cst_49 = arith.constant 0.000000e+00 : f32
    %153 = vector.broadcast %cst_49 : f32 to vector<8x16xf32>
    %154 = arith.subf %153, %152 : vector<8x16xf32>
    %155 = tpu.concatenate %154, %151 in 1 : vector<8x16xf32>, vector<8x16xf32> -> vector<8x32xf32>
    %156 = arith.mulf %150, %43 : vector<8x32xf32>
    %157 = arith.mulf %155, %44 : vector<8x32xf32>
    %158 = arith.addf %156, %157 : vector<8x32xf32>
    %159 = arith.truncf %158 : vector<8x32xf32> to vector<8x32xbf16>
    %160 = vector.extract_strided_slice %42 {offsets = [0, 64], sizes = [8, 32], strides = [1, 1]} : vector<8x128xf32> to vector<8x32xf32>
    %161 = arith.truncf %160 : vector<8x32xf32> to vector<8x32xbf16>
    %cst_50 = arith.constant dense<0.000000e+00> : vector<8x8xf32>
    %162 = tpu.matmul %149, %159, %cst_50 {dimension_numbers = #tpu.dot_dimension_numbers<[1], [1], [0], [0], [0, 0, 1, 0], [], []>} : vector<8x32xbf16>, vector<8x32xbf16>, vector<8x8xf32> -> vector<8x8xf32>
    %163 = arith.addf %162, %56 : vector<8x8xf32>
    %cst_51 = arith.constant dense<0xFF800000> : vector<8xf32>
    %164 = vector.multi_reduction <maximumf>, %163, %cst_51 [1] : vector<8x8xf32> to vector<8xf32>
    %165 = vector.shape_cast %164 : vector<8xf32> to vector<8x1xf32>
    %166 = vector.broadcast %165 : vector<8x1xf32> to vector<8x8xf32>
    %167 = arith.subf %163, %166 : vector<8x8xf32>
    %168 = math.exp %167 : vector<8x8xf32>
    %cst_52 = arith.constant dense<0.000000e+00> : vector<8xf32>
    %169 = vector.multi_reduction <add>, %168, %cst_52 [1] : vector<8x8xf32> to vector<8xf32>
    %170 = vector.shape_cast %169 : vector<8xf32> to vector<8x1xf32>
    %171 = arith.truncf %168 : vector<8x8xf32> to vector<8x8xbf16>
    %cst_53 = arith.constant dense<0.000000e+00> : vector<8x32xf32>
    %172 = tpu.matmul %171, %161, %cst_53 {dimension_numbers = #tpu.dot_dimension_numbers<[1], [0], [0], [1], [0, 0, 1, 1], [], []>} : vector<8x8xbf16>, vector<8x32xbf16>, vector<8x32xf32> -> vector<8x32xf32>
    %173 = tpu.reciprocal %170 {approx = true} : vector<8x1xf32> -> vector<8x1xf32>
    %174 = vector.broadcast %173 : vector<8x1xf32> to vector<8x32xf32>
    %175 = arith.mulf %172, %174 : vector<8x32xf32>
    %176 = arith.truncf %175 : vector<8x32xf32> to vector<8x32xbf16>
    %c2 = arith.constant 2 : index
    %c0_54 = arith.constant 0 : index
    %c0_55 = arith.constant 0 : index
    %177 = vector.load %arg7[%c2, %c0_54, %c0_55] : memref<4x32x128xbf16, #tpu.memory_space<vmem>>, vector<1x32x128xbf16>
    %178 = vector.shape_cast %177 : vector<1x32x128xbf16> to vector<32x128xbf16>
    %cst_56 = arith.constant dense<0.000000e+00> : vector<8x128xf32>
    %179 = tpu.matmul %176, %178, %cst_56 {dimension_numbers = #tpu.dot_dimension_numbers<[1], [0], [0], [1], [0, 0, 1, 1], [], []>} : vector<8x32xbf16>, vector<32x128xbf16>, vector<8x128xf32> -> vector<8x128xf32>
    %180 = arith.addf %139, %179 : vector<8x128xf32>
    %181 = vector.extract_strided_slice %38 {offsets = [0, 96], sizes = [8, 32], strides = [1, 1]} : vector<8x128xf32> to vector<8x32xf32>
    %182 = vector.extract_strided_slice %181 {offsets = [0, 0], sizes = [8, 16], strides = [1, 1]} : vector<8x32xf32> to vector<8x16xf32>
    %183 = vector.extract_strided_slice %181 {offsets = [0, 16], sizes = [8, 16], strides = [1, 1]} : vector<8x32xf32> to vector<8x16xf32>
    %cst_57 = arith.constant 0.000000e+00 : f32
    %184 = vector.broadcast %cst_57 : f32 to vector<8x16xf32>
    %185 = arith.subf %184, %183 : vector<8x16xf32>
    %186 = tpu.concatenate %185, %182 in 1 : vector<8x16xf32>, vector<8x16xf32> -> vector<8x32xf32>
    %187 = arith.mulf %181, %46 : vector<8x32xf32>
    %188 = arith.mulf %186, %48 : vector<8x32xf32>
    %189 = arith.addf %187, %188 : vector<8x32xf32>
    %190 = arith.truncf %189 : vector<8x32xf32> to vector<8x32xbf16>
    %191 = vector.extract_strided_slice %40 {offsets = [0, 96], sizes = [8, 32], strides = [1, 1]} : vector<8x128xf32> to vector<8x32xf32>
    %192 = vector.extract_strided_slice %191 {offsets = [0, 0], sizes = [8, 16], strides = [1, 1]} : vector<8x32xf32> to vector<8x16xf32>
    %193 = vector.extract_strided_slice %191 {offsets = [0, 16], sizes = [8, 16], strides = [1, 1]} : vector<8x32xf32> to vector<8x16xf32>
    %cst_58 = arith.constant 0.000000e+00 : f32
    %194 = vector.broadcast %cst_58 : f32 to vector<8x16xf32>
    %195 = arith.subf %194, %193 : vector<8x16xf32>
    %196 = tpu.concatenate %195, %192 in 1 : vector<8x16xf32>, vector<8x16xf32> -> vector<8x32xf32>
    %197 = arith.mulf %191, %43 : vector<8x32xf32>
    %198 = arith.mulf %196, %44 : vector<8x32xf32>
    %199 = arith.addf %197, %198 : vector<8x32xf32>
    %200 = arith.truncf %199 : vector<8x32xf32> to vector<8x32xbf16>
    %201 = vector.extract_strided_slice %42 {offsets = [0, 96], sizes = [8, 32], strides = [1, 1]} : vector<8x128xf32> to vector<8x32xf32>
    %202 = arith.truncf %201 : vector<8x32xf32> to vector<8x32xbf16>
    %cst_59 = arith.constant dense<0.000000e+00> : vector<8x8xf32>
    %203 = tpu.matmul %190, %200, %cst_59 {dimension_numbers = #tpu.dot_dimension_numbers<[1], [1], [0], [0], [0, 0, 1, 0], [], []>} : vector<8x32xbf16>, vector<8x32xbf16>, vector<8x8xf32> -> vector<8x8xf32>
    %204 = arith.addf %203, %56 : vector<8x8xf32>
    %cst_60 = arith.constant dense<0xFF800000> : vector<8xf32>
    %205 = vector.multi_reduction <maximumf>, %204, %cst_60 [1] : vector<8x8xf32> to vector<8xf32>
    %206 = vector.shape_cast %205 : vector<8xf32> to vector<8x1xf32>
    %207 = vector.broadcast %206 : vector<8x1xf32> to vector<8x8xf32>
    %208 = arith.subf %204, %207 : vector<8x8xf32>
    %209 = math.exp %208 : vector<8x8xf32>
    %cst_61 = arith.constant dense<0.000000e+00> : vector<8xf32>
    %210 = vector.multi_reduction <add>, %209, %cst_61 [1] : vector<8x8xf32> to vector<8xf32>
    %211 = vector.shape_cast %210 : vector<8xf32> to vector<8x1xf32>
    %212 = arith.truncf %209 : vector<8x8xf32> to vector<8x8xbf16>
    %cst_62 = arith.constant dense<0.000000e+00> : vector<8x32xf32>
    %213 = tpu.matmul %212, %202, %cst_62 {dimension_numbers = #tpu.dot_dimension_numbers<[1], [0], [0], [1], [0, 0, 1, 1], [], []>} : vector<8x8xbf16>, vector<8x32xbf16>, vector<8x32xf32> -> vector<8x32xf32>
    %214 = tpu.reciprocal %211 {approx = true} : vector<8x1xf32> -> vector<8x1xf32>
    %215 = vector.broadcast %214 : vector<8x1xf32> to vector<8x32xf32>
    %216 = arith.mulf %213, %215 : vector<8x32xf32>
    %217 = arith.truncf %216 : vector<8x32xf32> to vector<8x32xbf16>
    %c3 = arith.constant 3 : index
    %c0_63 = arith.constant 0 : index
    %c0_64 = arith.constant 0 : index
    %218 = vector.load %arg7[%c3, %c0_63, %c0_64] : memref<4x32x128xbf16, #tpu.memory_space<vmem>>, vector<1x32x128xbf16>
    %219 = vector.shape_cast %218 : vector<1x32x128xbf16> to vector<32x128xbf16>
    %cst_65 = arith.constant dense<0.000000e+00> : vector<8x128xf32>
    %220 = tpu.matmul %217, %219, %cst_65 {dimension_numbers = #tpu.dot_dimension_numbers<[1], [0], [0], [1], [0, 0, 1, 1], [], []>} : vector<8x32xbf16>, vector<32x128xbf16>, vector<8x128xf32> -> vector<8x128xf32>
    %221 = arith.addf %180, %220 : vector<8x128xf32>
    %222 = arith.addf %6, %221 : vector<8x128xf32>
    %c0_66 = arith.constant 0 : index
    %c0_67 = arith.constant 0 : index
    %223 = vector.load %arg8[%c0_66, %c0_67] : memref<1x128xf32, #tpu.memory_space<vmem>>, vector<1x128xf32>
    %224 = vector.shape_cast %223 : vector<1x128xf32> to vector<128xf32>
    %225 = arith.mulf %222, %222 : vector<8x128xf32>
    %cst_68 = arith.constant dense<0.000000e+00> : vector<8xf32>
    %226 = vector.multi_reduction <add>, %225, %cst_68 [1] : vector<8x128xf32> to vector<8xf32>
    %227 = vector.shape_cast %226 : vector<8xf32> to vector<8x1xf32>
    %cst_69 = arith.constant 1.280000e+02 : f32
    %228 = vector.broadcast %cst_69 : f32 to vector<8x1xf32>
    %229 = arith.divf %227, %228 : vector<8x1xf32>
    %cst_70 = arith.constant 9.99999974E-6 : f32
    %230 = vector.broadcast %cst_70 : f32 to vector<8x1xf32>
    %231 = arith.addf %229, %230 : vector<8x1xf32>
    %232 = math.rsqrt %231 : vector<8x1xf32>
    %233 = vector.broadcast %232 : vector<8x1xf32> to vector<8x128xf32>
    %234 = arith.mulf %222, %233 : vector<8x128xf32>
    %235 = vector.shape_cast %224 : vector<128xf32> to vector<1x128xf32>
    %236 = vector.broadcast %235 : vector<1x128xf32> to vector<8x128xf32>
    %237 = arith.mulf %234, %236 : vector<8x128xf32>
    %238 = arith.truncf %237 : vector<8x128xf32> to vector<8x128xbf16>
    %c0_71 = arith.constant 0 : index
    %c0_72 = arith.constant 0 : index
    %239 = vector.load %arg9[%c0_71, %c0_72] : memref<128x256xbf16, #tpu.memory_space<vmem>>, vector<128x256xbf16>
    %cst_73 = arith.constant dense<0.000000e+00> : vector<8x256xf32>
    %240 = tpu.matmul %238, %239, %cst_73 {dimension_numbers = #tpu.dot_dimension_numbers<[1], [0], [0], [1], [0, 0, 1, 1], [], []>} : vector<8x128xbf16>, vector<128x256xbf16>, vector<8x256xf32> -> vector<8x256xf32>
    %c0_74 = arith.constant 0 : index
    %c0_75 = arith.constant 0 : index
    %241 = vector.load %arg10[%c0_74, %c0_75] : memref<128x256xbf16, #tpu.memory_space<vmem>>, vector<128x256xbf16>
    %cst_76 = arith.constant dense<0.000000e+00> : vector<8x256xf32>
    %242 = tpu.matmul %238, %241, %cst_76 {dimension_numbers = #tpu.dot_dimension_numbers<[1], [0], [0], [1], [0, 0, 1, 1], [], []>} : vector<8x128xbf16>, vector<128x256xbf16>, vector<8x256xf32> -> vector<8x256xf32>
    %243 = arith.negf %240 : vector<8x256xf32>
    %244 = math.exp %243 : vector<8x256xf32>
    %cst_77 = arith.constant 1.000000e+00 : f32
    %245 = vector.broadcast %cst_77 : f32 to vector<8x256xf32>
    %246 = arith.addf %245, %244 : vector<8x256xf32>
    %247 = arith.divf %245, %246 : vector<8x256xf32>
    %248 = arith.mulf %240, %247 : vector<8x256xf32>
    %249 = arith.mulf %248, %242 : vector<8x256xf32>
    %250 = arith.truncf %249 : vector<8x256xf32> to vector<8x256xbf16>
    %c0_78 = arith.constant 0 : index
    %c0_79 = arith.constant 0 : index
    %251 = vector.load %arg11[%c0_78, %c0_79] : memref<256x128xbf16, #tpu.memory_space<vmem>>, vector<256x128xbf16>
    %cst_80 = arith.constant dense<0.000000e+00> : vector<8x128xf32>
    %252 = tpu.matmul %250, %251, %cst_80 {dimension_numbers = #tpu.dot_dimension_numbers<[1], [0], [0], [1], [0, 0, 1, 1], [], []>} : vector<8x256xbf16>, vector<256x128xbf16>, vector<8x128xf32> -> vector<8x128xf32>
    %253 = arith.addf %222, %252 : vector<8x128xf32>
    %c0_81 = arith.constant 0 : index
    %c0_82 = arith.constant 0 : index
    %c0_83 = arith.constant 0 : index
    %254 = vector.load %arg14[%c0_81, %c0_82, %c0_83] : memref<1x8x128xf32, #tpu.memory_space<vmem>>, vector<1x8x128xf32>
    %255 = vector.shape_cast %254 : vector<1x8x128xf32> to vector<8x128xf32>
    %256 = vector.shape_cast %253 : vector<8x128xf32> to vector<1x8x128xf32>
    tpu.vector_store %arg14[%c0_81, %c0_82, %c0_83], %256 {strides = array<i32>} : memref<1x8x128xf32, #tpu.memory_space<vmem>>, vector<1x8x128xf32>,
    return
  }
  func.func @transform_0(%arg0: i32, %arg1: i32) -> (i32, i32, i32) {
    %c0_i32 = arith.constant 0 : i32
    %c0_i32_0 = arith.constant 0 : i32
    %c0_i32_1 = arith.constant 0 : i32
    return %arg0, %c0_i32, %c0_i32_0 : i32, i32, i32
  }
  func.func @transform_1(%arg0: i32, %arg1: i32) -> (i32, i32) {
    %c0_i32 = arith.constant 0 : i32
    %c0_i32_0 = arith.constant 0 : i32
    %c0_i32_1 = arith.constant 0 : i32
    return %c0_i32, %c0_i32_0 : i32, i32
  }
  func.func @transform_2(%arg0: i32, %arg1: i32) -> (i32, i32) {
    %c0_i32 = arith.constant 0 : i32
    %c0_i32_0 = arith.constant 0 : i32
    %c0_i32_1 = arith.constant 0 : i32
    return %c0_i32, %c0_i32_0 : i32, i32
  }
  func.func @transform_3(%arg0: i32, %arg1: i32) -> (i32, i32) {
    %c0_i32 = arith.constant 0 : i32
    %c0_i32_0 = arith.constant 0 : i32
    %c0_i32_1 = arith.constant 0 : i32
    return %c0_i32, %c0_i32_0 : i32, i32
  }
  func.func @transform_4(%arg0: i32, %arg1: i32) -> (i32, i32) {
    %c0_i32 = arith.constant 0 : i32
    %c0_i32_0 = arith.constant 0 : i32
    %c0_i32_1 = arith.constant 0 : i32
    return %c0_i32, %c0_i32_0 : i32, i32
  }
  func.func @transform_5(%arg0: i32, %arg1: i32) -> (i32, i32, i32) {
    %c0_i32 = arith.constant 0 : i32
    %c0_i32_0 = arith.constant 0 : i32
    %c0_i32_1 = arith.constant 0 : i32
    %c0_i32_2 = arith.constant 0 : i32
    return %c0_i32, %c0_i32_0, %c0_i32_1 : i32, i32, i32
  }
  func.func @transform_6(%arg0: i32, %arg1: i32) -> (i32, i32) {
    %c0_i32 = arith.constant 0 : i32
    %c0_i32_0 = arith.constant 0 : i32
    %c0_i32_1 = arith.constant 0 : i32
    return %c0_i32, %c0_i32_0 : i32, i32
  }
  func.func @transform_7(%arg0: i32, %arg1: i32) -> (i32, i32) {
    %c0_i32 = arith.constant 0 : i32
    %c0_i32_0 = arith.constant 0 : i32
    %c0_i32_1 = arith.constant 0 : i32
    return %c0_i32, %c0_i32_0 : i32, i32
  }
  func.func @transform_8(%arg0: i32, %arg1: i32) -> (i32, i32) {
    %c0_i32 = arith.constant 0 : i32
    %c0_i32_0 = arith.constant 0 : i32
    %c0_i32_1 = arith.constant 0 : i32
    return %c0_i32, %c0_i32_0 : i32, i32
  }
  func.func @transform_9(%arg0: i32, %arg1: i32) -> (i32, i32) {
    %c0_i32 = arith.constant 0 : i32
    %c0_i32_0 = arith.constant 0 : i32
    %c0_i32_1 = arith.constant 0 : i32
    return %c0_i32, %c0_i32_0 : i32, i32
  }
  func.func @transform_10(%arg0: i32, %arg1: i32) -> (i32, i32) {
    %c0_i32 = arith.constant 0 : i32
    %c0_i32_0 = arith.constant 0 : i32
    %c0_i32_1 = arith.constant 0 : i32
    return %c0_i32, %c0_i32_0 : i32, i32
  }
  func.func @transform_11(%arg0: i32, %arg1: i32) -> (i32, i32) {
    %c0_i32 = arith.constant 0 : i32
    %c0_i32_0 = arith.constant 0 : i32
    %c0_i32_1 = arith.constant 0 : i32
    return %c0_i32, %c0_i32_0 : i32, i32
  }
  func.func @transform_12(%arg0: i32, %arg1: i32) -> (i32, i32, i32) {
    %c0_i32 = arith.constant 0 : i32
    %c0_i32_0 = arith.constant 0 : i32
    return %arg0, %arg1, %c0_i32 : i32, i32, i32
  }
}

</mosaic_0001>

<llo_original>
// kernel: tpu_custom_call.1
$region0: #{tpu_custom_call.1}
  #allocation0 [shape = 'u32[]', space=smem, size = 0x4, offset = 0x4, fixed_abs, tag = 'smem constant byte address 0x4 - core index']
  #allocation1 [shape = 'u32[144,128]{1,0:T(1,128)}', space=vmem, size = 0x12000, scoped, tag = 'internal scratch']
  %s0 = inlined_call_operand.hbm [shape: f32[2,8,128], index: 0, kind: input, shape index: {}]
  %s1 = inlined_call_operand.vmem [shape: f32[1,128], index: 1, kind: input, shape index: {}]
  %s2 = inlined_call_operand.hbm [shape: bf16[128,128], index: 2, kind: input, shape index: {}]
  %s3 = inlined_call_operand.hbm [shape: bf16[128,128], index: 3, kind: input, shape index: {}]
  %s4 = inlined_call_operand.hbm [shape: bf16[128,128], index: 4, kind: input, shape index: {}]
  %s5 = inlined_call_operand.hbm [shape: bf16[4,32,128], index: 5, kind: input, shape index: {}]
  %s6 = inlined_call_operand.vmem [shape: f32[1,128], index: 6, kind: input, shape index: {}]
  %s7 = inlined_call_operand.hbm [shape: bf16[128,256], index: 7, kind: input, shape index: {}]
  %s8 = inlined_call_operand.hbm [shape: bf16[128,256], index: 8, kind: input, shape index: {}]
  %s9 = inlined_call_operand.hbm [shape: bf16[256,128], index: 9, kind: input, shape index: {}]
  %s10 = inlined_call_operand.vmem [shape: f32[8,32], index: 10, kind: input, shape index: {}]
  %s11 = inlined_call_operand.vmem [shape: f32[8,32], index: 11, kind: input, shape index: {}]
  %s12 = inlined_call_operand.hbm [shape: f32[2,8,128], index: 12, kind: output, shape index: {}]
  %s13 = sld [smem:[#allocation0]]
  $region113: #{tpu_custom_call.1} parent=0
    _
  %s15 = ssub.s32 1, %s13
  %s16 = scalar_select 0, %s15, %s13
  $region1: #{tpu_custom_call.1} parent=0
    #allocation2 [shape = 'u8[8192]{0}', space=vmem, size = 0x2000, scoped, tag = 'input window, operand 0']
    #allocation3 [shape = 's32[2]{0}', space=sflag, size = 0x8, scoped, tag = 'scoped memory for tpu_custom_call.1']
    #allocation4 [shape = 's32[2]{0}', space=sflag, size = 0x8, scoped, tag = 'scoped memory for tpu_custom_call.1']
    #allocation5 [shape = 'u8[32768]{0}', space=vmem, size = 0x8000, scoped, tag = 'input window, operand 2, single buffered']
    #allocation6 [shape = 's32[1]{0}', space=sflag, size = 0x4, scoped, tag = 'scoped memory for tpu_custom_call.1']
    #allocation7 [shape = 'u8[32768]{0}', space=vmem, size = 0x8000, scoped, tag = 'input window, operand 3, single buffered']
    #allocation8 [shape = 'u8[32768]{0}', space=vmem, size = 0x8000, scoped, tag = 'input window, operand 4, single buffered']
    #allocation9 [shape = 's32[1]{0}', space=sflag, size = 0x4, scoped, tag = 'scoped memory for tpu_custom_call.1']
    #allocation10 [shape = 'u8[32768]{0}', space=vmem, size = 0x8000, scoped, tag = 'input window, operand 5, single buffered']
    #allocation11 [shape = 'u8[65536]{0}', space=vmem, size = 0x10000, scoped, tag = 'input window, operand 7, single buffered']
    #allocation12 [shape = 's32[1]{0}', space=sflag, size = 0x4, scoped, tag = 'scoped memory for tpu_custom_call.1']
    #allocation13 [shape = 'u8[65536]{0}', space=vmem, size = 0x10000, scoped, tag = 'input window, operand 8, single buffered']
    #allocation14 [shape = 'u8[65536]{0}', space=vmem, size = 0x10000, scoped, tag = 'input window, operand 9, single buffered']
    #allocation15 [shape = 's32[1]{0}', space=sflag, size = 0x4, scoped, tag = 'scoped memory for tpu_custom_call.1']
    #allocation16 [shape = 'u8[8192]{0}', space=vmem, size = 0x2000, scoped, tag = 'output window, operand 0']
    %17 = vsyncpa [#allocation3], 0
    %s18 = scalar_lea.sflag [#allocation3], 1
    %19 = vsyncpa %s18, 0
    %20 = vsyncpa [#allocation6], 0
    %21 = vsyncpa [#allocation9], 0
    %22 = vsyncpa [#allocation12], 0
    %23 = vsyncpa [#allocation15], 0
    %24 = vsyncpa [#allocation4], 0
    %s25 = scalar_lea.sflag [#allocation4], 1
    %26 = vsyncpa %s25, 0
    loop: start=0, step=1, limit=4
    $region2: #{tpu_custom_call.1} parent=1 // loop_pre_header
      _
    $region3: #{tpu_custom_call.1} parent=1 // loop_header
      %s28 = sphi 0, %s32
      %p29 = scmp.ge.s32.totalorder %s28, 4
      %s35 = sphi 0, %s47
      %s36 = sphi 0, %s43
      %s37 = sphi 0, %s35
      %s38 = sphi 0, %s36
      %s39 = sphi 0, %s37
      %s40 = sphi 0, %s38
      %s50 = sphi 0, %s52
      %s53 = sphi 0, %s50
      %s54 = sphi 0, %s53
      %s70 = sphi 0, %s54
      %s74 = sphi 0, %s74
      %s76 = sphi 0, %s74
      %s77 = sphi 0, %s76
      %s91 = sphi 0, %s77
      %s95 = sphi 0, %s95
      %s97 = sphi 0, %s95
      %s98 = sphi 0, %s97
      %s112 = sphi 0, %s98
      %s116 = sphi 0, %s116
      %s118 = sphi 0, %s116
      %s119 = sphi 0, %s118
      %s133 = sphi 0, %s119
      %s137 = sphi 0, %s137
      %s139 = sphi 0, %s137
      %s140 = sphi 0, %s139
      %s154 = sphi 0, %s140
      %s158 = sphi 0, %s158
      %s160 = sphi 0, %s158
      %s161 = sphi 0, %s160
      %s175 = sphi 0, %s161
      %s179 = sphi 0, %s179
      %s181 = sphi 0, %s179
      %s182 = sphi 0, %s181
      %s196 = sphi 0, %s182
      %s200 = sphi 0, %s200
      %s202 = sphi 0, %s200
      %s203 = sphi 0, %s202
      %s217 = sphi 0, %s203
      %s221 = sphi 0, %s221
      %s223 = sphi 0, %s221
      %s224 = sphi 0, %s223
      %s238 = sphi 0, %s224
      %s242 = sphi 0, %s242
      %s244 = sphi 0, %s242
      %s245 = sphi 0, %s244
      %s259 = sphi 0, %s245
      %s263 = sphi 0, %s263
      %s265 = sphi 0, %s263
      %s266 = sphi 0, %s265
      %s280 = sphi 0, %s266
      %s284 = sphi 0, %s284
      %s286 = sphi 0, %s284
      %s287 = sphi 0, %s286
      %s301 = sphi 0, %s287
      %s309 = sphi 0, %s311
      %s312 = sphi 0, %s309
      %s313 = sphi 0, %s312
      %s329 = sphi 0, %s313
    $region4: #{tpu_custom_call.1} parent=1 // loop_header_branch
      %31 = sbr.rel (%p29) target = $region8
    $region5: #{tpu_custom_call.1} parent=1 // loop_body
      %s33 = ssub.s32 %s28, 1
      %s34 = ssub.s32 %s28, 2
      %s41 = sadd.s32 1, %s36
      %p42 = scmp.ge.s32.totalorder %s41, 1
      %s43 = scalar_select %p42, 0, %s41
      %s44 = sadd.s32 1, %s35
      %s45 = scalar_select %p42, %s44, %s35
      %p46 = scmp.ge.s32.totalorder %s45, 2
      %s47 = scalar_select %p46, 0, %s45
      %s48 = ssub.s32 %s35, %s47
      %p49 = scmp.eq.s32.totalorder %s48, 0
      %s51 = sadd.s32 %s50, 1
      %s52 = scalar_select %p49, %s50, %s51
      %p55 = pneg %p49
      %p56 = scmp.eq.s32.totalorder %s28, 1
      %p57 = por %p55, %p56
      %p58 = scmp.ne.s32.totalorder %s50, %s53
      %p59 = scmp.eq.s32.totalorder %s28, 0
      %p60 = por %p58, %p59
      %p61 = scmp.ne.s32.totalorder %s50, %s53
      %p62 = scmp.eq.s32.totalorder %s33, 1
      %p63 = por %p61, %p62
      %p64 = scmp.ne.s32.totalorder %s53, %s54
      %p65 = scmp.eq.s32.totalorder %s33, 0
      %p66 = por %p64, %p65
      %p67 = scmp.ne.s32.totalorder %s53, %s54
      %p68 = scmp.eq.s32.totalorder %s34, 1
      %p69 = por %p67, %p68
      %p71 = scmp.ne.s32.totalorder %s54, %s70
      %p72 = scmp.eq.s32.totalorder %s34, 0
      %p73 = por %p71, %p72
      %s75 = sadd.s32 %s74, 1
      %p78 = scmp.eq.s32.totalorder %s28, 1
      %p79 = scmp.ne.s32.totalorder %s74, %s76
      %p80 = scmp.eq.s32.totalorder %s28, 0
      %p81 = por %p79, %p80
      %p82 = scmp.ne.s32.totalorder %s74, %s76
      %p83 = scmp.eq.s32.totalorder %s33, 1
      %p84 = por %p82, %p83
      %p85 = scmp.ne.s32.totalorder %s76, %s77
      %p86 = scmp.eq.s32.totalorder %s33, 0
      %p87 = por %p85, %p86
      %p88 = scmp.ne.s32.totalorder %s76, %s77
      %p89 = scmp.eq.s32.totalorder %s34, 1
      %p90 = por %p88, %p89
      %p92 = scmp.ne.s32.totalorder %s77, %s91
      %p93 = scmp.eq.s32.totalorder %s34, 0
      %p94 = por %p92, %p93
      %s96 = sadd.s32 %s95, 1
      %p99 = scmp.eq.s32.totalorder %s28, 1
      %p100 = scmp.ne.s32.totalorder %s95, %s97
      %p101 = scmp.eq.s32.totalorder %s28, 0
      %p102 = por %p100, %p101
      %p103 = scmp.ne.s32.totalorder %s95, %s97
      %p104 = scmp.eq.s32.totalorder %s33, 1
      %p105 = por %p103, %p104
      %p106 = scmp.ne.s32.totalorder %s97, %s98
      %p107 = scmp.eq.s32.totalorder %s33, 0
      %p108 = por %p106, %p107
      %p109 = scmp.ne.s32.totalorder %s97, %s98
      %p110 = scmp.eq.s32.totalorder %s34, 1
      %p111 = por %p109, %p110
      %p113 = scmp.ne.s32.totalorder %s98, %s112
      %p114 = scmp.eq.s32.totalorder %s34, 0
      %p115 = por %p113, %p114
      %s117 = sadd.s32 %s116, 1
      %p120 = scmp.eq.s32.totalorder %s28, 1
      %p121 = scmp.ne.s32.totalorder %s116, %s118
      %p122 = scmp.eq.s32.totalorder %s28, 0
      %p123 = por %p121, %p122
      %p124 = scmp.ne.s32.totalorder %s116, %s118
      %p125 = scmp.eq.s32.totalorder %s33, 1
      %p126 = por %p124, %p125
      %p127 = scmp.ne.s32.totalorder %s118, %s119
      %p128 = scmp.eq.s32.totalorder %s33, 0
      %p129 = por %p127, %p128
      %p130 = scmp.ne.s32.totalorder %s118, %s119
      %p131 = scmp.eq.s32.totalorder %s34, 1
      %p132 = por %p130, %p131
      %p134 = scmp.ne.s32.totalorder %s119, %s133
      %p135 = scmp.eq.s32.totalorder %s34, 0
      %p136 = por %p134, %p135
      %s138 = sadd.s32 %s137, 1
      %p141 = scmp.eq.s32.totalorder %s28, 1
      %p142 = scmp.ne.s32.totalorder %s137, %s139
      %p143 = scmp.eq.s32.totalorder %s28, 0
      %p144 = por %p142, %p143
      %p145 = scmp.ne.s32.totalorder %s137, %s139
      %p146 = scmp.eq.s32.totalorder %s33, 1
      %p147 = por %p145, %p146
      %p148 = scmp.ne.s32.totalorder %s139, %s140
      %p149 = scmp.eq.s32.totalorder %s33, 0
      %p150 = por %p148, %p149
      %p151 = scmp.ne.s32.totalorder %s139, %s140
      %p152 = scmp.eq.s32.totalorder %s34, 1
      %p153 = por %p151, %p152
      %p155 = scmp.ne.s32.totalorder %s140, %s154
      %p156 = scmp.eq.s32.totalorder %s34, 0
      %p157 = por %p155, %p156
      %s159 = sadd.s32 %s158, 1
      %p162 = scmp.eq.s32.totalorder %s28, 1
      %p163 = scmp.ne.s32.totalorder %s158, %s160
      %p164 = scmp.eq.s32.totalorder %s28, 0
      %p165 = por %p163, %p164
      %p166 = scmp.ne.s32.totalorder %s158, %s160
      %p167 = scmp.eq.s32.totalorder %s33, 1
      %p168 = por %p166, %p167
      %p169 = scmp.ne.s32.totalorder %s160, %s161
      %p170 = scmp.eq.s32.totalorder %s33, 0
      %p171 = por %p169, %p170
      %p172 = scmp.ne.s32.totalorder %s160, %s161
      %p173 = scmp.eq.s32.totalorder %s34, 1
      %p174 = por %p172, %p173
      %p176 = scmp.ne.s32.totalorder %s161, %s175
      %p177 = scmp.eq.s32.totalorder %s34, 0
      %p178 = por %p176, %p177
      %s180 = sadd.s32 %s179, 1
      %p183 = scmp.eq.s32.totalorder %s28, 1
      %p184 = scmp.ne.s32.totalorder %s179, %s181
      %p185 = scmp.eq.s32.totalorder %s28, 0
      %p186 = por %p184, %p185
      %p187 = scmp.ne.s32.totalorder %s179, %s181
      %p188 = scmp.eq.s32.totalorder %s33, 1
      %p189 = por %p187, %p188
      %p190 = scmp.ne.s32.totalorder %s181, %s182
      %p191 = scmp.eq.s32.totalorder %s33, 0
      %p192 = por %p190, %p191
      %p193 = scmp.ne.s32.totalorder %s181, %s182
      %p194 = scmp.eq.s32.totalorder %s34, 1
      %p195 = por %p193, %p194
      %p197 = scmp.ne.s32.totalorder %s182, %s196
      %p198 = scmp.eq.s32.totalorder %s34, 0
      %p199 = por %p197, %p198
      %s201 = sadd.s32 %s200, 1
      %p204 = scmp.eq.s32.totalorder %s28, 1
      %p205 = scmp.ne.s32.totalorder %s200, %s202
      %p206 = scmp.eq.s32.totalorder %s28, 0
      %p207 = por %p205, %p206
      %p208 = scmp.ne.s32.totalorder %s200, %s202
      %p209 = scmp.eq.s32.totalorder %s33, 1
      %p210 = por %p208, %p209
      %p211 = scmp.ne.s32.totalorder %s202, %s203
      %p212 = scmp.eq.s32.totalorder %s33, 0
      %p213 = por %p211, %p212
      %p214 = scmp.ne.s32.totalorder %s202, %s203
      %p215 = scmp.eq.s32.totalorder %s34, 1
      %p216 = por %p214, %p215
      %p218 = scmp.ne.s32.totalorder %s203, %s217
      %p219 = scmp.eq.s32.totalorder %s34, 0
      %p220 = por %p218, %p219
      %s222 = sadd.s32 %s221, 1
      %p225 = scmp.eq.s32.totalorder %s28, 1
      %p226 = scmp.ne.s32.totalorder %s221, %s223
      %p227 = scmp.eq.s32.totalorder %s28, 0
      %p228 = por %p226, %p227
      %p229 = scmp.ne.s32.totalorder %s221, %s223
      %p230 = scmp.eq.s32.totalorder %s33, 1
      %p231 = por %p229, %p230
      %p232 = scmp.ne.s32.totalorder %s223, %s224
      %p233 = scmp.eq.s32.totalorder %s33, 0
      %p234 = por %p232, %p233
      %p235 = scmp.ne.s32.totalorder %s223, %s224
      %p236 = scmp.eq.s32.totalorder %s34, 1
      %p237 = por %p235, %p236
      %p239 = scmp.ne.s32.totalorder %s224, %s238
      %p240 = scmp.eq.s32.totalorder %s34, 0
      %p241 = por %p239, %p240
      %s243 = sadd.s32 %s242, 1
      %p246 = scmp.eq.s32.totalorder %s28, 1
      %p247 = scmp.ne.s32.totalorder %s242, %s244
      %p248 = scmp.eq.s32.totalorder %s28, 0
      %p249 = por %p247, %p248
      %p250 = scmp.ne.s32.totalorder %s242, %s244
      %p251 = scmp.eq.s32.totalorder %s33, 1
      %p252 = por %p250, %p251
      %p253 = scmp.ne.s32.totalorder %s244, %s245
      %p254 = scmp.eq.s32.totalorder %s33, 0
      %p255 = por %p253, %p254
      %p256 = scmp.ne.s32.totalorder %s244, %s245
      %p257 = scmp.eq.s32.totalorder %s34, 1
      %p258 = por %p256, %p257
      %p260 = scmp.ne.s32.totalorder %s245, %s259
      %p261 = scmp.eq.s32.totalorder %s34, 0
      %p262 = por %p260, %p261
      %s264 = sadd.s32 %s263, 1
      %p267 = scmp.eq.s32.totalorder %s28, 1
      %p268 = scmp.ne.s32.totalorder %s263, %s265
      %p269 = scmp.eq.s32.totalorder %s28, 0
      %p270 = por %p268, %p269
      %p271 = scmp.ne.s32.totalorder %s263, %s265
      %p272 = scmp.eq.s32.totalorder %s33, 1
      %p273 = por %p271, %p272
      %p274 = scmp.ne.s32.totalorder %s265, %s266
      %p275 = scmp.eq.s32.totalorder %s33, 0
      %p276 = por %p274, %p275
      %p277 = scmp.ne.s32.totalorder %s265, %s266
      %p278 = scmp.eq.s32.totalorder %s34, 1
      %p279 = por %p277, %p278
      %p281 = scmp.ne.s32.totalorder %s266, %s280
      %p282 = scmp.eq.s32.totalorder %s34, 0
      %p283 = por %p281, %p282
      %s285 = sadd.s32 %s284, 1
      %p288 = scmp.eq.s32.totalorder %s28, 1
      %p289 = scmp.ne.s32.totalorder %s284, %s286
      %p290 = scmp.eq.s32.totalorder %s28, 0
      %p291 = por %p289, %p290
      %p292 = scmp.ne.s32.totalorder %s284, %s286
      %p293 = scmp.eq.s32.totalorder %s33, 1
      %p294 = por %p292, %p293
      %p295 = scmp.ne.s32.totalorder %s286, %s287
      %p296 = scmp.eq.s32.totalorder %s33, 0
      %p297 = por %p295, %p296
      %p298 = scmp.ne.s32.totalorder %s286, %s287
      %p299 = scmp.eq.s32.totalorder %s34, 1
      %p300 = por %p298, %p299
      %p302 = scmp.ne.s32.totalorder %s287, %s301
      %p303 = scmp.eq.s32.totalorder %s34, 0
      %p304 = por %p302, %p303
      %s305 = ssub.s32 %s35, %s47
      %s306 = ssub.s32 %s36, %s43
      %s307 = sor.u32 %s305, %s306
      %p308 = scmp.eq.s32.totalorder %s307, 0
      %s310 = sadd.s32 %s309, 1
      %s311 = scalar_select %p308, %s309, %s310
      %p314 = pneg %p308
      %p315 = scmp.eq.s32.totalorder %s28, 1
      %p316 = por %p314, %p315
      %p317 = scmp.ne.s32.totalorder %s309, %s312
      %p318 = scmp.eq.s32.totalorder %s28, 0
      %p319 = por %p317, %p318
      %p320 = scmp.ne.s32.totalorder %s309, %s312
      %p321 = scmp.eq.s32.totalorder %s33, 1
      %p322 = por %p320, %p321
      %p323 = scmp.ne.s32.totalorder %s312, %s313
      %p324 = scmp.eq.s32.totalorder %s33, 0
      %p325 = por %p323, %p324
      %p326 = scmp.ne.s32.totalorder %s312, %s313
      %p327 = scmp.eq.s32.totalorder %s34, 1
      %p328 = por %p326, %p327
      %p330 = scmp.ne.s32.totalorder %s313, %s329
      %p331 = scmp.eq.s32.totalorder %s34, 0
      %p332 = por %p330, %p331
      %p333 = scmp.le.s32.totalorder 1, %s28
      %p334 = scmp.lt.s32.totalorder %s28, 3
      %p335 = pnand %p333, %p334
      %p336 = pneg %p335
      // Predicated region
      $region9: #{tpu_custom_call.1} parent=5 // pred_check
        _
      $region10: #{tpu_custom_call.1} parent=5 // pred_check_branch
        %338 = sbr.rel (%p335) target = $region12
      $region11: #{tpu_custom_call.1} parent=5 // pred_region
        %s339 = ssub.s32 %s28, 1
        // Predicated region
        $region13: #{tpu_custom_call.1} parent=11 // pred_check
          %p340 = pneg %p87
        $region14: #{tpu_custom_call.1} parent=11 // pred_check_branch
          %342 = sbr.rel (%p340) target = $region16
        $region15: #{tpu_custom_call.1} parent=11 // pred_region
          _
        $region16: #{tpu_custom_call.1} parent=11 // pred_fallthru
          _
        // Predicated region
        $region17: #{tpu_custom_call.1} parent=11 // pred_check
          %p343 = pneg %p108
        $region18: #{tpu_custom_call.1} parent=11 // pred_check_branch
          %345 = sbr.rel (%p343) target = $region20
        $region19: #{tpu_custom_call.1} parent=11 // pred_region
          %s347 = ssub.s32 1024, 1024
          %348 = vsyncadd [#allocation6], %s347
          %s349 = sshll.u32 [#allocation5], 4
          %s350 = int_to_ptr.vmem [resolvable:$true] %s349
          %355 = dma.hbm_to_vmem [thread:$0]  %s2, 1024, %s350, [#allocation6], 64, 64, 4
        $region20: #{tpu_custom_call.1} parent=11 // pred_fallthru
          _
        // Predicated region
        $region21: #{tpu_custom_call.1} parent=11 // pred_check
          %p356 = pneg %p129
        $region22: #{tpu_custom_call.1} parent=11 // pred_check_branch
          %358 = sbr.rel (%p356) target = $region24
        $region23: #{tpu_custom_call.1} parent=11 // pred_region
          %s360 = ssub.s32 1024, 1024
          %361 = vsyncadd [#allocation6], %s360
          %s362 = sshll.u32 [#allocation7], 4
          %s363 = int_to_ptr.vmem [resolvable:$true] %s362
          %368 = dma.hbm_to_vmem [thread:$0]  %s3, 1024, %s363, [#allocation6], 64, 64, 4
        $region24: #{tpu_custom_call.1} parent=11 // pred_fallthru
          _
        // Predicated region
        $region25: #{tpu_custom_call.1} parent=11 // pred_check
          %p369 = pneg %p150
        $region26: #{tpu_custom_call.1} parent=11 // pred_check_branch
          %371 = sbr.rel (%p369) target = $region28
        $region27: #{tpu_custom_call.1} parent=11 // pred_region
          %s373 = ssub.s32 1024, 1024
          %374 = vsyncadd [#allocation9], %s373
          %s375 = sshll.u32 [#allocation8], 4
          %s376 = int_to_ptr.vmem [resolvable:$true] %s375
          %381 = dma.hbm_to_vmem [thread:$0]  %s4, 1024, %s376, [#allocation9], 64, 64, 4
        $region28: #{tpu_custom_call.1} parent=11 // pred_fallthru
          _
        // Predicated region
        $region29: #{tpu_custom_call.1} parent=11 // pred_check
          %p382 = pneg %p171
        $region30: #{tpu_custom_call.1} parent=11 // pred_check_branch
          %384 = sbr.rel (%p382) target = $region32
        $region31: #{tpu_custom_call.1} parent=11 // pred_region
          %s386 = ssub.s32 1024, 1024
          %387 = vsyncadd [#allocation9], %s386
          %s388 = sshll.u32 [#allocation10], 4
          %s389 = int_to_ptr.vmem [resolvable:$true] %s388
          %394 = dma.hbm_to_vmem [thread:$0]  %s5, 1024, %s389, [#allocation9], 64, 64, 4
        $region32: #{tpu_custom_call.1} parent=11 // pred_fallthru
          _
        // Predicated region
        $region33: #{tpu_custom_call.1} parent=11 // pred_check
          %p395 = pneg %p192
        $region34: #{tpu_custom_call.1} parent=11 // pred_check_branch
          %397 = sbr.rel (%p395) target = $region36
        $region35: #{tpu_custom_call.1} parent=11 // pred_region
          _
        $region36: #{tpu_custom_call.1} parent=11 // pred_fallthru
          _
        // Predicated region
        $region37: #{tpu_custom_call.1} parent=11 // pred_check
          %p398 = pneg %p213
        $region38: #{tpu_custom_call.1} parent=11 // pred_check_branch
          %400 = sbr.rel (%p398) target = $region40
        $region39: #{tpu_custom_call.1} parent=11 // pred_region
          %s402 = ssub.s32 2048, 2048
          %403 = vsyncadd [#allocation12], %s402
          %s404 = sshll.u32 [#allocation11], 4
          %s405 = int_to_ptr.vmem [resolvable:$true] %s404
          %410 = dma.hbm_to_vmem [thread:$0]  %s7, 2048, %s405, [#allocation12], 128, 128, 8
        $region40: #{tpu_custom_call.1} parent=11 // pred_fallthru
          _
        // Predicated region
        $region41: #{tpu_custom_call.1} parent=11 // pred_check
          %p411 = pneg %p234
        $region42: #{tpu_custom_call.1} parent=11 // pred_check_branch
          %413 = sbr.rel (%p411) target = $region44
        $region43: #{tpu_custom_call.1} parent=11 // pred_region
          %s415 = ssub.s32 2048, 2048
          %416 = vsyncadd [#allocation12], %s415
          %s417 = sshll.u32 [#allocation13], 4
          %s418 = int_to_ptr.vmem [resolvable:$true] %s417
          %423 = dma.hbm_to_vmem [thread:$0]  %s8, 2048, %s418, [#allocation12], 128, 128, 8
        $region44: #{tpu_custom_call.1} parent=11 // pred_fallthru
          _
        // Predicated region
        $region45: #{tpu_custom_call.1} parent=11 // pred_check
          %p424 = pneg %p255
        $region46: #{tpu_custom_call.1} parent=11 // pred_check_branch
          %426 = sbr.rel (%p424) target = $region48
        $region47: #{tpu_custom_call.1} parent=11 // pred_region
          %s428 = ssub.s32 2048, 2048
          %429 = vsyncadd [#allocation15], %s428
          %s430 = sshll.u32 [#allocation14], 4
          %s431 = int_to_ptr.vmem [resolvable:$true] %s430
          %436 = dma.hbm_to_vmem [thread:$0]  %s9, 2048, %s431, [#allocation15], 64, 64, 4
        $region48: #{tpu_custom_call.1} parent=11 // pred_fallthru
          _
        // Predicated region
        $region49: #{tpu_custom_call.1} parent=11 // pred_check
          %p437 = pneg %p276
        $region50: #{tpu_custom_call.1} parent=11 // pred_check_branch
          %439 = sbr.rel (%p437) target = $region52
        $region51: #{tpu_custom_call.1} parent=11 // pred_region
          _
        $region52: #{tpu_custom_call.1} parent=11 // pred_fallthru
          _
        // Predicated region
        $region53: #{tpu_custom_call.1} parent=11 // pred_check
          %p440 = pneg %p297
        $region54: #{tpu_custom_call.1} parent=11 // pred_check_branch
          %442 = sbr.rel (%p440) target = $region56
        $region55: #{tpu_custom_call.1} parent=11 // pred_region
          _
        $region56: #{tpu_custom_call.1} parent=11 // pred_fallthru
          _
      $region12: #{tpu_custom_call.1} parent=5 // pred_fallthru
        _
      %p443 = scmp.lt.s32.totalorder %s28, 2
      // Predicated region
      $region57: #{tpu_custom_call.1} parent=5 // pred_check
        %p444 = pneg %p443
      $region58: #{tpu_custom_call.1} parent=5 // pred_check_branch
        %446 = sbr.rel (%p444) target = $region60
      $region59: #{tpu_custom_call.1} parent=5 // pred_region
        // Predicated region
        $region61: #{tpu_custom_call.1} parent=59 // pred_check
          %p447 = pneg %p60
        $region62: #{tpu_custom_call.1} parent=59 // pred_check_branch
          %449 = sbr.rel (%p447) target = $region64
        $region63: #{tpu_custom_call.1} parent=59 // pred_region
          %s450 = sand.u32 %s50, 1
          %s451 = scalar_lea.sflag [#allocation3], %s450
          %s452 = sand.u32 %s50, 1
          %s453 = smul.addr %s452, 8
          %s454 = scalar_lea.vmem [#allocation2], %s453
          %s456 = ssub.s32 128, 128
          %457 = vsyncadd %s451, %s456
          %s458 = smul.addr %s35, 128
          %s459 = scalar_lea.hbm %s0, %s458
          %s461 = sshll.u32 %s454, 4
          %s462 = int_to_ptr.vmem [resolvable:$true] %s461
          %464 = dma.hbm_to_vmem [thread:$0]  %s459, 128, %s462, %s451
        $region64: #{tpu_custom_call.1} parent=59 // pred_fallthru
          _
      $region60: #{tpu_custom_call.1} parent=5 // pred_fallthru
        _
      %p465 = scmp.le.s32.totalorder 1, %s28
      %p466 = scmp.lt.s32.totalorder %s28, 3
      %p467 = pnand %p465, %p466
      %p468 = pneg %p467
      // Predicated region
      $region65: #{tpu_custom_call.1} parent=5 // pred_check
        _
      $region66: #{tpu_custom_call.1} parent=5 // pred_check_branch
        %470 = sbr.rel (%p467) target = $region68
      $region67: #{tpu_custom_call.1} parent=5 // pred_region
        %s471 = ssub.s32 %s28, 1
        %s472 = sand.u32 %s53, 1
        %s473 = scalar_lea.sflag [#allocation3], %s472
        %s474 = sand.u32 %s53, 1
        %s475 = smul.addr %s474, 8
        %s476 = scalar_lea.vmem [#allocation2], %s475
        // Predicated region
        $region69: #{tpu_custom_call.1} parent=67 // pred_check
          %p477 = pneg %p66
        $region70: #{tpu_custom_call.1} parent=67 // pred_check_branch
          %479 = sbr.rel (%p477) target = $region72
        $region71: #{tpu_custom_call.1} parent=67 // pred_region
          %480 = dma.done %s473, 128
        $region72: #{tpu_custom_call.1} parent=67 // pred_fallthru
          _
        // Predicated region
        $region73: #{tpu_custom_call.1} parent=67 // pred_check
          %p481 = pneg %p108
        $region74: #{tpu_custom_call.1} parent=67 // pred_check_branch
          %483 = sbr.rel (%p481) target = $region76
        $region75: #{tpu_custom_call.1} parent=67 // pred_region
          %484 = dma.done [#allocation6], 1024
        $region76: #{tpu_custom_call.1} parent=67 // pred_fallthru
          _
        // Predicated region
        $region77: #{tpu_custom_call.1} parent=67 // pred_check
          %p485 = pneg %p129
        $region78: #{tpu_custom_call.1} parent=67 // pred_check_branch
          %487 = sbr.rel (%p485) target = $region80
        $region79: #{tpu_custom_call.1} parent=67 // pred_region
          %488 = dma.done [#allocation6], 1024
        $region80: #{tpu_custom_call.1} parent=67 // pred_fallthru
          _
        // Predicated region
        $region81: #{tpu_custom_call.1} parent=67 // pred_check
          %p489 = pneg %p150
        $region82: #{tpu_custom_call.1} parent=67 // pred_check_branch
          %491 = sbr.rel (%p489) target = $region84
        $region83: #{tpu_custom_call.1} parent=67 // pred_region
          %492 = dma.done [#allocation9], 1024
        $region84: #{tpu_custom_call.1} parent=67 // pred_fallthru
          _
        // Predicated region
        $region85: #{tpu_custom_call.1} parent=67 // pred_check
          %p493 = pneg %p171
        $region86: #{tpu_custom_call.1} parent=67 // pred_check_branch
          %495 = sbr.rel (%p493) target = $region88
        $region87: #{tpu_custom_call.1} parent=67 // pred_region
          %496 = dma.done [#allocation9], 1024
        $region88: #{tpu_custom_call.1} parent=67 // pred_fallthru
          _
        // Predicated region
        $region89: #{tpu_custom_call.1} parent=67 // pred_check
          %p497 = pneg %p213
        $region90: #{tpu_custom_call.1} parent=67 // pred_check_branch
          %499 = sbr.rel (%p497) target = $region92
        $region91: #{tpu_custom_call.1} parent=67 // pred_region
          %500 = dma.done [#allocation12], 2048
        $region92: #{tpu_custom_call.1} parent=67 // pred_fallthru
          _
        // Predicated region
        $region93: #{tpu_custom_call.1} parent=67 // pred_check
          %p501 = pneg %p234
        $region94: #{tpu_custom_call.1} parent=67 // pred_check_branch
          %503 = sbr.rel (%p501) target = $region96
        $region95: #{tpu_custom_call.1} parent=67 // pred_region
          %504 = dma.done [#allocation12], 2048
        $region96: #{tpu_custom_call.1} parent=67 // pred_fallthru
          _
        // Predicated region
        $region97: #{tpu_custom_call.1} parent=67 // pred_check
          %p505 = pneg %p255
        $region98: #{tpu_custom_call.1} parent=67 // pred_check_branch
          %507 = sbr.rel (%p505) target = $region100
        $region99: #{tpu_custom_call.1} parent=67 // pred_region
          %508 = dma.done [#allocation15], 2048
        $region100: #{tpu_custom_call.1} parent=67 // pred_fallthru
          _
        %s509 = sand.u32 %s53, 1
        %s510 = scalar_lea.sflag [#allocation3], %s509
        %s511 = sand.u32 %s53, 1
        %s512 = smul.addr %s511, 8
        %s513 = scalar_lea.vmem [#allocation2], %s512
        %p514 = pneg %p66
        %p515 = pneg %p63
        %p516 = pneg %p87
        %p517 = pneg %p84
        %p518 = pneg %p108
        %p519 = pneg %p105
        %p520 = pneg %p129
        %p521 = pneg %p126
        %p522 = pneg %p150
        %p523 = pneg %p147
        %p524 = pneg %p171
        %p525 = pneg %p168
        %p526 = pneg %p192
        %p527 = pneg %p189
        %p528 = pneg %p213
        %p529 = pneg %p210
        %p530 = pneg %p234
        %p531 = pneg %p231
        %p532 = pneg %p255
        %p533 = pneg %p252
        %p534 = pneg %p276
        %p535 = pneg %p273
        %p536 = pneg %p297
        %p537 = pneg %p294
        %p538 = pneg %p325
        %p539 = pneg %p322
        %s540 = sand.u32 %s312, 1
        %s541 = scalar_lea.sflag [#allocation4], %s540
        %s542 = sand.u32 %s312, 1
        %s543 = smul.addr %s542, 8
        %s544 = scalar_lea.vmem [#allocation16], %s543
        %s546 = smul.u32 %s38, 8
        %v547 = vld [vmem:[%s476] sm:$0xff]
        %s548 = scalar_lea.vmem %s476, %s546 [#allocation2]
        %v549 = vld [vmem:[%s548] sm:$0xff]
        %v550 = vld [vmem:[%s1] sm:$0x1]
        %v551 = vmul.f32 %v547, %v547
        %552 = vadd.xlane.f32.xlu0 %v551
        %v553 = vpop.xlane.xlu0 %552
        %v554 = vrcp.pop 128.0
        %v555 = vmul.f32 %v553, %v554
        %v556 = vadd.f32 %v555, 1e-05
        %v557 = vrsqrt.pop %v556
        %v558 = vmul.f32 %v547, %v557
        %v560 = vlaneseq
        %v561 = vshrl.u32 %v560, 7
        %v562 = vsub.s32 0, %v561
        %v563 = vrot.slane %v550, %v562
        %v565 = vmul.f32 %v558, %v563
        %v566 = vpack.c.bf16 %v565, %v565
        %v567 = vmul.f32 %v549, %v549
        %568 = vadd.xlane.f32.xlu0 %v567
        %v569 = vpop.xlane.xlu0 %568
        %v570 = vmul.f32 %v569, %v554
        %v571 = vadd.f32 %v570, 1e-05
        %v572 = vrsqrt.pop %v571
        %v573 = vmul.f32 %v549, %v572
        %v574 = vmul.f32 %v573, %v563
        %v575 = vpack.c.bf16 %v574, %v574
        %v576 = vld [vmem:[#allocation5] sm:$0xf]
        %v577 = vld [vmem:[#allocation5 + $0x4] sm:$0xf]
        %v578 = vld [vmem:[#allocation5 + $0x8] sm:$0xf]
        %v579 = vld [vmem:[#allocation5 + $0xc] sm:$0xf]
        %v580 = vld [vmem:[#allocation5 + $0x10] sm:$0xf]
        %v581 = vld [vmem:[#allocation5 + $0x14] sm:$0xf]
        %v582 = vld [vmem:[#allocation5 + $0x18] sm:$0xf]
        %v583 = vld [vmem:[#allocation5 + $0x1c] sm:$0xf]
        %v584 = vld [vmem:[#allocation5 + $0x20] sm:$0xf]
        %v585 = vld [vmem:[#allocation5 + $0x24] sm:$0xf]
        %v586 = vld [vmem:[#allocation5 + $0x28] sm:$0xf]
        %v587 = vld [vmem:[#allocation5 + $0x2c] sm:$0xf]
        %v588 = vld [vmem:[#allocation5 + $0x30] sm:$0xf]
        %v589 = vld [vmem:[#allocation5 + $0x34] sm:$0xf]
        %v590 = vld [vmem:[#allocation5 + $0x38] sm:$0xf]
        %v591 = vld [vmem:[#allocation5 + $0x3c] sm:$0xf]
        %v608 = vunpack.c.l.b16 %v576
        %v609 = vunpack.c.l.b16 %v577
        %v610 = vunpack.c.l.b16 %v578
        %v611 = vunpack.c.l.b16 %v579
        %v612 = vunpack.c.l.b16 %v580
        %v613 = vunpack.c.l.b16 %v581
        %v614 = vunpack.c.l.b16 %v582
        %v615 = vunpack.c.l.b16 %v583
        %v616 = vunpack.c.l.b16 %v584
        %v617 = vunpack.c.l.b16 %v585
        %v618 = vunpack.c.l.b16 %v586
        %v619 = vunpack.c.l.b16 %v587
        %v620 = vunpack.c.l.b16 %v588
        %v621 = vunpack.c.l.b16 %v589
        %v622 = vunpack.c.l.b16 %v590
        %v623 = vunpack.c.l.b16 %v591
        %v624 = vpack.c.b16 %v609, %v608
        %v625 = vpack.c.b16 %v611, %v610
        %v626 = vpack.c.b16 %v613, %v612
        %v627 = vpack.c.b16 %v615, %v614
        %v628 = vpack.c.b16 %v617, %v616
        %v629 = vpack.c.b16 %v619, %v618
        %v630 = vpack.c.b16 %v621, %v620
        %v631 = vpack.c.b16 %v623, %v622
        %640 = vmatprep.subr.bf16.mxu0 0
        %641 = vmatpush1.bf16.msra.mxu0 %v624
        %642 = vmatprep.subr.bf16.mxu0 0
        %643 = vmatpush1.bf16.msra.mxu0 %v625
        %644 = vmatprep.subr.bf16.mxu0 0
        %645 = vmatpush1.bf16.msra.mxu0 %v626
        %646 = vmatprep.subr.bf16.mxu0 0
        %647 = vmatpush1.bf16.msra.mxu0 %v627
        %648 = vmatprep.subr.bf16.mxu0 0
        %649 = vmatpush1.bf16.msra.mxu0 %v628
        %650 = vmatprep.subr.bf16.mxu0 0
        %651 = vmatpush1.bf16.msra.mxu0 %v629
        %652 = vmatprep.subr.bf16.mxu0 0
        %653 = vmatpush1.bf16.msra.mxu0 %v630
        %654 = vmatprep.subr.bf16.mxu0 0
        %655 = vmatpush1.bf16.msra.mxu0 %v631
        %656 = vmatprep.subr.bf16.mxu0 0
        %657 = vmatpush1.bf16.msra.mxu0 0
        %658 = vmatprep.subr.bf16.mxu0 0
        %659 = vmatpush1.bf16.msra.mxu0 0
        %660 = vmatprep.subr.bf16.mxu0 0
        %661 = vmatpush1.bf16.msra.mxu0 0
        %662 = vmatprep.subr.bf16.mxu0 0
        %663 = vmatpush1.bf16.msra.mxu0 0
        %664 = vmatprep.subr.bf16.mxu0 0
        %665 = vmatpush1.bf16.msra.mxu0 0
        %666 = vmatprep.subr.bf16.mxu0 0
        %667 = vmatpush1.bf16.msra.mxu0 0
        %668 = vmatprep.subr.bf16.mxu0 0
        %669 = vmatpush1.bf16.msra.mxu0 0
        %670 = vmatprep.subr.bf16.mxu0 0
        %671 = vmatpush1.bf16.msra.mxu0 0
        %672 = vmatprep.mubr.bf16.mxu0 0
        %673 = vmatmul.mubr.bf16.gmra.mrb[0].mxu0 %v575
        %v674 = vpop.f32.mrb[0].mxu0
        %v675 = vadd.f32 0.0, %v674
        %v676 = vpop.f32.mrb[0].mxu0
        %v677 = vpop.f32.mrb[0].mxu0
        %v678 = vpop.f32.mrb[0].mxu0
        %679 = vdwg.mxu0
        %v680 = vld [vmem:[#allocation7] sm:$0xf]
        %v681 = vld [vmem:[#allocation7 + $0x4] sm:$0xf]
        %v682 = vld [vmem:[#allocation7 + $0x8] sm:$0xf]
        %v683 = vld [vmem:[#allocation7 + $0xc] sm:$0xf]
        %v684 = vld [vmem:[#allocation7 + $0x10] sm:$0xf]
        %v685 = vld [vmem:[#allocation7 + $0x14] sm:$0xf]
        %v686 = vld [vmem:[#allocation7 + $0x18] sm:$0xf]
        %v687 = vld [vmem:[#allocation7 + $0x1c] sm:$0xf]
        %v688 = vld [vmem:[#allocation7 + $0x20] sm:$0xf]
        %v689 = vld [vmem:[#allocation7 + $0x24] sm:$0xf]
        %v690 = vld [vmem:[#allocation7 + $0x28] sm:$0xf]
        %v691 = vld [vmem:[#allocation7 + $0x2c] sm:$0xf]
        %v692 = vld [vmem:[#allocation7 + $0x30] sm:$0xf]
        %v693 = vld [vmem:[#allocation7 + $0x34] sm:$0xf]
        %v694 = vld [vmem:[#allocation7 + $0x38] sm:$0xf]
        %v695 = vld [vmem:[#allocation7 + $0x3c] sm:$0xf]
        %v712 = vunpack.c.l.b16 %v680
        %v713 = vunpack.c.l.b16 %v681
        %v714 = vunpack.c.l.b16 %v682
        %v715 = vunpack.c.l.b16 %v683
        %v716 = vunpack.c.l.b16 %v684
        %v717 = vunpack.c.l.b16 %v685
        %v718 = vunpack.c.l.b16 %v686
        %v719 = vunpack.c.l.b16 %v687
        %v720 = vunpack.c.l.b16 %v688
        %v721 = vunpack.c.l.b16 %v689
        %v722 = vunpack.c.l.b16 %v690
        %v723 = vunpack.c.l.b16 %v691
        %v724 = vunpack.c.l.b16 %v692
        %v725 = vunpack.c.l.b16 %v693
        %v726 = vunpack.c.l.b16 %v694
        %v727 = vunpack.c.l.b16 %v695
        %v728 = vpack.c.b16 %v713, %v712
        %v729 = vpack.c.b16 %v715, %v714
        %v730 = vpack.c.b16 %v717, %v716
        %v731 = vpack.c.b16 %v719, %v718
        %v732 = vpack.c.b16 %v721, %v720
        %v733 = vpack.c.b16 %v723, %v722
        %v734 = vpack.c.b16 %v725, %v724
        %v735 = vpack.c.b16 %v727, %v726
        %744 = vmatprep.subr.bf16.mxu0 0
        %745 = vmatpush1.bf16.msra.mxu0 %v728
        %746 = vmatprep.subr.bf16.mxu0 0
        %747 = vmatpush1.bf16.msra.mxu0 %v729
        %748 = vmatprep.subr.bf16.mxu0 0
        %749 = vmatpush1.bf16.msra.mxu0 %v730
        %750 = vmatprep.subr.bf16.mxu0 0
        %751 = vmatpush1.bf16.msra.mxu0 %v731
        %752 = vmatprep.subr.bf16.mxu0 0
        %753 = vmatpush1.bf16.msra.mxu0 %v732
        %754 = vmatprep.subr.bf16.mxu0 0
        %755 = vmatpush1.bf16.msra.mxu0 %v733
        %756 = vmatprep.subr.bf16.mxu0 0
        %757 = vmatpush1.bf16.msra.mxu0 %v734
        %758 = vmatprep.subr.bf16.mxu0 0
        %759 = vmatpush1.bf16.msra.mxu0 %v735
        %760 = vmatprep.subr.bf16.mxu0 0
        %761 = vmatpush1.bf16.msra.mxu0 0
        %762 = vmatprep.subr.bf16.mxu0 0
        %763 = vmatpush1.bf16.msra.mxu0 0
        %764 = vmatprep.subr.bf16.mxu0 0
        %765 = vmatpush1.bf16.msra.mxu0 0
        %766 = vmatprep.subr.bf16.mxu0 0
        %767 = vmatpush1.bf16.msra.mxu0 0
        %768 = vmatprep.subr.bf16.mxu0 0
        %769 = vmatpush1.bf16.msra.mxu0 0
        %770 = vmatprep.subr.bf16.mxu0 0
        %771 = vmatpush1.bf16.msra.mxu0 0
        %772 = vmatprep.subr.bf16.mxu0 0
        %773 = vmatpush1.bf16.msra.mxu0 0
        %774 = vmatprep.subr.bf16.mxu0 0
        %775 = vmatpush1.bf16.msra.mxu0 0
        %776 = vmatprep.mubr.bf16.mxu0 0
        %777 = vmatmul.mubr.bf16.gmra.mrb[0].mxu0 %v566
        %v778 = vpop.f32.mrb[0].mxu0
        %v779 = vadd.f32 0.0, %v778
        %v780 = vpop.f32.mrb[0].mxu0
        %v781 = vpop.f32.mrb[0].mxu0
        %v782 = vpop.f32.mrb[0].mxu0
        %783 = vdwg.mxu0
        %v784 = vld [vmem:[#allocation8] sm:$0xf]
        %v785 = vld [vmem:[#allocation8 + $0x4] sm:$0xf]
        %v786 = vld [vmem:[#allocation8 + $0x8] sm:$0xf]
        %v787 = vld [vmem:[#allocation8 + $0xc] sm:$0xf]
        %v788 = vld [vmem:[#allocation8 + $0x10] sm:$0xf]
        %v789 = vld [vmem:[#allocation8 + $0x14] sm:$0xf]
        %v790 = vld [vmem:[#allocation8 + $0x18] sm:$0xf]
        %v791 = vld [vmem:[#allocation8 + $0x1c] sm:$0xf]
        %v792 = vld [vmem:[#allocation8 + $0x20] sm:$0xf]
        %v793 = vld [vmem:[#allocation8 + $0x24] sm:$0xf]
        %v794 = vld [vmem:[#allocation8 + $0x28] sm:$0xf]
        %v795 = vld [vmem:[#allocation8 + $0x2c] sm:$0xf]
        %v796 = vld [vmem:[#allocation8 + $0x30] sm:$0xf]
        %v797 = vld [vmem:[#allocation8 + $0x34] sm:$0xf]
        %v798 = vld [vmem:[#allocation8 + $0x38] sm:$0xf]
        %v799 = vld [vmem:[#allocation8 + $0x3c] sm:$0xf]
        %v816 = vunpack.c.l.b16 %v784
        %v817 = vunpack.c.l.b16 %v785
        %v818 = vunpack.c.l.b16 %v786
        %v819 = vunpack.c.l.b16 %v787
        %v820 = vunpack.c.l.b16 %v788
        %v821 = vunpack.c.l.b16 %v789
        %v822 = vunpack.c.l.b16 %v790
        %v823 = vunpack.c.l.b16 %v791
        %v824 = vunpack.c.l.b16 %v792
        %v825 = vunpack.c.l.b16 %v793
        %v826 = vunpack.c.l.b16 %v794
        %v827 = vunpack.c.l.b16 %v795
        %v828 = vunpack.c.l.b16 %v796
        %v829 = vunpack.c.l.b16 %v797
        %v830 = vunpack.c.l.b16 %v798
        %v831 = vunpack.c.l.b16 %v799
        %v832 = vpack.c.b16 %v817, %v816
        %v833 = vpack.c.b16 %v819, %v818
        %v834 = vpack.c.b16 %v821, %v820
        %v835 = vpack.c.b16 %v823, %v822
        %v836 = vpack.c.b16 %v825, %v824
        %v837 = vpack.c.b16 %v827, %v826
        %v838 = vpack.c.b16 %v829, %v828
        %v839 = vpack.c.b16 %v831, %v830
        %848 = vmatprep.subr.bf16.mxu0 0
        %849 = vmatpush1.bf16.msra.mxu0 %v832
        %850 = vmatprep.subr.bf16.mxu0 0
        %851 = vmatpush1.bf16.msra.mxu0 %v833
        %852 = vmatprep.subr.bf16.mxu0 0
        %853 = vmatpush1.bf16.msra.mxu0 %v834
        %854 = vmatprep.subr.bf16.mxu0 0
        %855 = vmatpush1.bf16.msra.mxu0 %v835
        %856 = vmatprep.subr.bf16.mxu0 0
        %857 = vmatpush1.bf16.msra.mxu0 %v836
        %858 = vmatprep.subr.bf16.mxu0 0
        %859 = vmatpush1.bf16.msra.mxu0 %v837
        %860 = vmatprep.subr.bf16.mxu0 0
        %861 = vmatpush1.bf16.msra.mxu0 %v838
        %862 = vmatprep.subr.bf16.mxu0 0
        %863 = vmatpush1.bf16.msra.mxu0 %v839
        %864 = vmatprep.subr.bf16.mxu0 0
        %865 = vmatpush1.bf16.msra.mxu0 0
        %866 = vmatprep.subr.bf16.mxu0 0
        %867 = vmatpush1.bf16.msra.mxu0 0
        %868 = vmatprep.subr.bf16.mxu0 0
        %869 = vmatpush1.bf16.msra.mxu0 0
        %870 = vmatprep.subr.bf16.mxu0 0
        %871 = vmatpush1.bf16.msra.mxu0 0
        %872 = vmatprep.subr.bf16.mxu0 0
        %873 = vmatpush1.bf16.msra.mxu0 0
        %874 = vmatprep.subr.bf16.mxu0 0
        %875 = vmatpush1.bf16.msra.mxu0 0
        %876 = vmatprep.subr.bf16.mxu0 0
        %877 = vmatpush1.bf16.msra.mxu0 0
        %878 = vmatprep.subr.bf16.mxu0 0
        %879 = vmatpush1.bf16.msra.mxu0 0
        %880 = vmatprep.mubr.bf16.mxu0 0
        %881 = vmatmul.mubr.bf16.gmra.mrb[0].mxu0 %v566
        %v882 = vpop.f32.mrb[0].mxu0
        %v883 = vadd.f32 0.0, %v882
        %v884 = vpop.f32.mrb[0].mxu0
        %v885 = vpop.f32.mrb[0].mxu0
        %v886 = vpop.f32.mrb[0].mxu0
        %887 = vdwg.mxu0
        %v888 = vld [vmem:[%s10] sm:$0xff]
        %v889 = vld [vmem:[%s11] sm:$0xff]
        %s890 = scalar_lea.vmem %s10, %s546
        %v891 = vld [vmem:[%s890] sm:$0xff]
        %s892 = scalar_lea.vmem %s11, %s546
        %v893 = vld [vmem:[%s892] sm:$0xff]
        %v894 = vlaneseq
        %v895 = vshrl.u32 %v894, 7
        %v896 = vstv %s546
        %v897 = vadd.s32 %v895, %v896
        %v898 = vlaneseq
        %v899 = vand.u32 %v898, 127
        %vm900 = vcmp.ge.s32.totalorder %v897, %v899
        %v901 = vsel %vm900, 0.0, -1e+30
        %v902 = vsub.f32 0.0, %v675
        %904 = vrot.lane.b32.xlu0 %v902, 112
        %v905 = vpop.permute.xlu0 %904
        %908 = vrot.lane.b32.xlu0 %v675, 16
        %v909 = vpop.permute.xlu0 %908
        %vm911 = vcmask 130048
        %v912 = vsel %vm911, %v905, %v909
        %v913 = vmul.f32 %v675, %v891
        %v914 = vmul.f32 %v912, %v893
        %v915 = vadd.f32 %v913, %v914
        %v916 = vpack.c.bf16 %v915, %v915
        %v917 = vsub.f32 0.0, %v779
        %919 = vrot.lane.b32.xlu0 %v917, 112
        %v920 = vpop.permute.xlu0 %919
        %923 = vrot.lane.b32.xlu0 %v779, 16
        %v924 = vpop.permute.xlu0 %923
        %v926 = vsel %vm911, %v920, %v924
        %v927 = vmul.f32 %v779, %v888
        %v928 = vmul.f32 %v926, %v889
        %v929 = vadd.f32 %v927, %v928
        %v930 = vpack.c.bf16 %v929, %v929
        %v931 = vpack.c.bf16 %v883, %v883
        %vm932 = vcmask 261120
        %v934 = vsel %vm932, %v916, 0
        %v937 = vsel %vm932, %v930, 0
        %939 = vmatprep.subr.bf16.mxu0 0
        %940 = vmatpush1.bf16.xpose.msra.mxu0 %v937
        %941 = vmatprep.subr.bf16.mxu0 0
        %942 = vmatpush1.bf16.xpose.msra.mxu0 0
        %943 = vmatprep.subr.bf16.mxu0 0
        %944 = vmatpush1.bf16.xpose.msra.mxu0 0
        %945 = vmatprep.subr.bf16.mxu0 0
        %946 = vmatpush1.bf16.xpose.msra.mxu0 0
        %947 = vmatprep.subr.bf16.mxu0 0
        %948 = vmatpush1.bf16.xpose.msra.mxu0 0
        %949 = vmatprep.subr.bf16.mxu0 0
        %950 = vmatpush1.bf16.xpose.msra.mxu0 0
        %951 = vmatprep.subr.bf16.mxu0 0
        %952 = vmatpush1.bf16.xpose.msra.mxu0 0
        %953 = vmatprep.subr.bf16.mxu0 0
        %954 = vmatpush1.bf16.xpose.msra.mxu0 0
        %955 = vmatprep.subr.bf16.mxu0 0
        %956 = vmatpush1.bf16.xpose.msra.mxu0 0
        %957 = vmatprep.subr.bf16.mxu0 0
        %958 = vmatpush1.bf16.xpose.msra.mxu0 0
        %959 = vmatprep.subr.bf16.mxu0 0
        %960 = vmatpush1.bf16.xpose.msra.mxu0 0
        %961 = vmatprep.subr.bf16.mxu0 0
        %962 = vmatpush1.bf16.xpose.msra.mxu0 0
        %963 = vmatprep.subr.bf16.mxu0 0
        %964 = vmatpush1.bf16.xpose.msra.mxu0 0
        %965 = vmatprep.subr.bf16.mxu0 0
        %966 = vmatpush1.bf16.xpose.msra.mxu0 0
        %967 = vmatprep.subr.bf16.mxu0 0
        %968 = vmatpush1.bf16.xpose.msra.mxu0 0
        %969 = vmatprep.subr.bf16.mxu0 0
        %970 = vmatpush1.bf16.xpose.msra.mxu0 0
        %971 = vmatprep.mubr.bf16.mxu0 0
        %972 = vmatmul.mubr.bf16.gmra.mrb[0].mxu0 %v934
        %v973 = vpop.f32.mrb[0].mxu0
        %v974 = vadd.f32 %v901, %v973
        %v975 = vpop.f32.mrb[0].mxu0
        %v976 = vpop.f32.mrb[0].mxu0
        %v977 = vpop.f32.mrb[0].mxu0
        %978 = vdwg.mxu0
        %vm979 = vcmask 64512
        %v980 = vsel %vm979, %v974, -inf
        %981 = vmax.xlane.f32.xlu0 %v980
        %v982 = vpop.xlane.xlu0 %981
        %v983 = vsub.f32 %v974, %v982
        %v984 = vmul.f32 %v983, 1.442695
        %v985 = vpow.pop %v984
        %v986 = vsel %vm979, %v985, 0.0
        %987 = vadd.xlane.f32.xlu0 %v986
        %v988 = vpop.xlane.xlu0 %987
        %v989 = vpack.c.bf16 %v985, %v985
        %v991 = vsel %vm979, %v989, 0
        %vm993 = vcmask 1043456
        %v995 = vsel %vm993, %v931, 0
        %997 = vmatprep.subr.bf16.mxu0 0
        %998 = vmatpush1.bf16.msra.mxu0 %v995
        %999 = vmatprep.subr.bf16.mxu0 0
        %1000 = vmatpush1.bf16.msra.mxu0 0
        %1001 = vmatprep.subr.bf16.mxu0 0
        %1002 = vmatpush1.bf16.msra.mxu0 0
        %1003 = vmatprep.subr.bf16.mxu0 0
        %1004 = vmatpush1.bf16.msra.mxu0 0
        %1005 = vmatprep.subr.bf16.mxu0 0
        %1006 = vmatpush1.bf16.msra.mxu0 0
        %1007 = vmatprep.subr.bf16.mxu0 0
        %1008 = vmatpush1.bf16.msra.mxu0 0
        %1009 = vmatprep.subr.bf16.mxu0 0
        %1010 = vmatpush1.bf16.msra.mxu0 0
        %1011 = vmatprep.subr.bf16.mxu0 0
        %1012 = vmatpush1.bf16.msra.mxu0 0
        %1013 = vmatprep.subr.bf16.mxu0 0
        %1014 = vmatpush1.bf16.msra.mxu0 0
        %1015 = vmatprep.subr.bf16.mxu0 0
        %1016 = vmatpush1.bf16.msra.mxu0 0
        %1017 = vmatprep.subr.bf16.mxu0 0
        %1018 = vmatpush1.bf16.msra.mxu0 0
        %1019 = vmatprep.subr.bf16.mxu0 0
        %1020 = vmatpush1.bf16.msra.mxu0 0
        %1021 = vmatprep.subr.bf16.mxu0 0
        %1022 = vmatpush1.bf16.msra.mxu0 0
        %1023 = vmatprep.subr.bf16.mxu0 0
        %1024 = vmatpush1.bf16.msra.mxu0 0
        %1025 = vmatprep.subr.bf16.mxu0 0
        %1026 = vmatpush1.bf16.msra.mxu0 0
        %1027 = vmatprep.subr.bf16.mxu0 0
        %1028 = vmatpush1.bf16.msra.mxu0 0
        %1029 = vmatprep.mubr.bf16.mxu0 0
        %1030 = vmatmul.mubr.bf16.gmra.mrb[0].mxu0 %v991
        %v1031 = vpop.f32.mrb[0].mxu0
        %v1032 = vadd.f32 0.0, %v1031
        %v1033 = vpop.f32.mrb[0].mxu0
        %v1034 = vpop.f32.mrb[0].mxu0
        %v1035 = vpop.f32.mrb[0].mxu0
        %1036 = vdwg.mxu0
        %v1037 = vrcp.pop %v988
        %v1038 = vmul.f32 %v1032, %v1037
        %v1039 = vpack.c.bf16 %v1038, %v1038
        %v1040 = vld [vmem:[#allocation10] sm:$0xf]
        %v1041 = vld [vmem:[#allocation10 + $0x4] sm:$0xf]
        %v1042 = vld [vmem:[#allocation10 + $0x8] sm:$0xf]
        %v1043 = vld [vmem:[#allocation10 + $0xc] sm:$0xf]
        %1044 = vrot.lane.b32.xlu0 %v902, 80
        %v1045 = vpop.permute.xlu0 %1044
        %1047 = vrot.lane.b32.xlu0 %v675, 112
        %v1048 = vpop.permute.xlu0 %1047
        %v1050 = vsel %vm911, %v1045, %v1048
        %1052 = vrot.lane.b32.xlu0 %v891, 32
        %v1053 = vpop.permute.xlu0 %1052
        %v1055 = vmul.f32 %v675, %v1053
        %v1056 = vmul.f32 %v1050, %v893
        %1058 = vrot.lane.b32.xlu0 %v1056, 32
        %v1059 = vpop.permute.xlu0 %1058
        %v1061 = vadd.f32 %v1055, %v1059
        %v1062 = vpack.c.bf16 %v1061, %v1061
        %1063 = vrot.lane.b32.xlu0 %v917, 80
        %v1064 = vpop.permute.xlu0 %1063
        %1066 = vrot.lane.b32.xlu0 %v779, 112
        %v1067 = vpop.permute.xlu0 %1066
        %v1069 = vsel %vm911, %v1064, %v1067
        %1071 = vrot.lane.b32.xlu0 %v888, 32
        %v1072 = vpop.permute.xlu0 %1071
        %v1074 = vmul.f32 %v779, %v1072
        %v1075 = vmul.f32 %v1069, %v889
        %1077 = vrot.lane.b32.xlu0 %v1075, 32
        %v1078 = vpop.permute.xlu0 %1077
        %v1080 = vadd.f32 %v1074, %v1078
        %v1081 = vpack.c.bf16 %v1080, %v1080
        %1083 = vrot.lane.b32.xlu0 %v1062, 96
        %v1084 = vpop.permute.xlu0 %1083
        %1086 = vrot.lane.b32.xlu0 %v1081, 96
        %v1087 = vpop.permute.xlu0 %1086
        %v1089 = vsel %vm932, %v1084, 0
        %v1092 = vsel %vm932, %v1087, 0
        %1094 = vmatprep.subr.bf16.mxu0 0
        %1095 = vmatpush1.bf16.xpose.msra.mxu0 %v1092
        %1096 = vmatprep.subr.bf16.mxu0 0
        %1097 = vmatpush1.bf16.xpose.msra.mxu0 0
        %1098 = vmatprep.subr.bf16.mxu0 0
        %1099 = vmatpush1.bf16.xpose.msra.mxu0 0
        %1100 = vmatprep.subr.bf16.mxu0 0
        %1101 = vmatpush1.bf16.xpose.msra.mxu0 0
        %1102 = vmatprep.subr.bf16.mxu0 0
        %1103 = vmatpush1.bf16.xpose.msra.mxu0 0
        %1104 = vmatprep.subr.bf16.mxu0 0
        %1105 = vmatpush1.bf16.xpose.msra.mxu0 0
        %1106 = vmatprep.subr.bf16.mxu0 0
        %1107 = vmatpush1.bf16.xpose.msra.mxu0 0
        %1108 = vmatprep.subr.bf16.mxu0 0
        %1109 = vmatpush1.bf16.xpose.msra.mxu0 0
        %1110 = vmatprep.subr.bf16.mxu0 0
        %1111 = vmatpush1.bf16.xpose.msra.mxu0 0
        %1112 = vmatprep.subr.bf16.mxu0 0
        %1113 = vmatpush1.bf16.xpose.msra.mxu0 0
        %1114 = vmatprep.subr.bf16.mxu0 0
        %1115 = vmatpush1.bf16.xpose.msra.mxu0 0
        %1116 = vmatprep.subr.bf16.mxu0 0
        %1117 = vmatpush1.bf16.xpose.msra.mxu0 0
        %1118 = vmatprep.subr.bf16.mxu0 0
        %1119 = vmatpush1.bf16.xpose.msra.mxu0 0
        %1120 = vmatprep.subr.bf16.mxu0 0
        %1121 = vmatpush1.bf16.xpose.msra.mxu0 0
        %1122 = vmatprep.subr.bf16.mxu0 0
        %1123 = vmatpush1.bf16.xpose.msra.mxu0 0
        %1124 = vmatprep.subr.bf16.mxu0 0
        %1125 = vmatpush1.bf16.xpose.msra.mxu0 0
        %1126 = vmatprep.mubr.bf16.mxu0 0
        %1127 = vmatmul.mubr.bf16.gmra.mrb[0].mxu0 %v1089
        %v1128 = vpop.f32.mrb[0].mxu0
        %v1129 = vadd.f32 %v901, %v1128
        %v1130 = vpop.f32.mrb[0].mxu0
        %v1131 = vpop.f32.mrb[0].mxu0
        %v1132 = vpop.f32.mrb[0].mxu0
        %1133 = vdwg.mxu0
        %v1134 = vsel %vm979, %v1129, -inf
        %1135 = vmax.xlane.f32.xlu0 %v1134
        %v1136 = vpop.xlane.xlu0 %1135
        %v1137 = vsub.f32 %v1129, %v1136
        %v1138 = vmul.f32 %v1137, 1.442695
        %v1139 = vpow.pop %v1138
        %v1140 = vsel %vm979, %v1139, 0.0
        %1141 = vadd.xlane.f32.xlu0 %v1140
        %v1142 = vpop.xlane.xlu0 %1141
        %v1143 = vpack.c.bf16 %v1139, %v1139
        %1145 = vrot.lane.b32.xlu0 %v931, 96
        %v1146 = vpop.permute.xlu0 %1145
        %v1148 = vsel %vm979, %v1143, 0
        %v1151 = vsel %vm993, %v1146, 0
        %1153 = vmatprep.subr.bf16.mxu0 0
        %1154 = vmatpush1.bf16.msra.mxu0 %v1151
        %1155 = vmatprep.subr.bf16.mxu0 0
        %1156 = vmatpush1.bf16.msra.mxu0 0
        %1157 = vmatprep.subr.bf16.mxu0 0
        %1158 = vmatpush1.bf16.msra.mxu0 0
        %1159 = vmatprep.subr.bf16.mxu0 0
        %1160 = vmatpush1.bf16.msra.mxu0 0
        %1161 = vmatprep.subr.bf16.mxu0 0
        %1162 = vmatpush1.bf16.msra.mxu0 0
        %1163 = vmatprep.subr.bf16.mxu0 0
        %1164 = vmatpush1.bf16.msra.mxu0 0
        %1165 = vmatprep.subr.bf16.mxu0 0
        %1166 = vmatpush1.bf16.msra.mxu0 0
        %1167 = vmatprep.subr.bf16.mxu0 0
        %1168 = vmatpush1.bf16.msra.mxu0 0
        %1169 = vmatprep.subr.bf16.mxu0 0
        %1170 = vmatpush1.bf16.msra.mxu0 0
        %1171 = vmatprep.subr.bf16.mxu0 0
        %1172 = vmatpush1.bf16.msra.mxu0 0
        %1173 = vmatprep.subr.bf16.mxu0 0
        %1174 = vmatpush1.bf16.msra.mxu0 0
        %1175 = vmatprep.subr.bf16.mxu0 0
        %1176 = vmatpush1.bf16.msra.mxu0 0
        %1177 = vmatprep.subr.bf16.mxu0 0
        %1178 = vmatpush1.bf16.msra.mxu0 0
        %1179 = vmatprep.subr.bf16.mxu0 0
        %1180 = vmatpush1.bf16.msra.mxu0 0
        %1181 = vmatprep.subr.bf16.mxu0 0
        %1182 = vmatpush1.bf16.msra.mxu0 0
        %1183 = vmatprep.subr.bf16.mxu0 0
        %1184 = vmatpush1.bf16.msra.mxu0 0
        %1185 = vmatprep.mubr.bf16.mxu0 0
        %1186 = vmatmul.mubr.bf16.gmra.mrb[0].mxu0 %v1148
        %v1187 = vpop.f32.mrb[0].mxu0
        %v1188 = vadd.f32 0.0, %v1187
        %v1189 = vpop.f32.mrb[0].mxu0
        %v1190 = vpop.f32.mrb[0].mxu0
        %v1191 = vpop.f32.mrb[0].mxu0
        %1192 = vdwg.mxu0
        %v1193 = vrcp.pop %v1142
        %v1194 = vmul.f32 %v1188, %v1193
        %v1195 = vpack.c.bf16 %v1194, %v1194
        %s1196 = scalar_lea.vmem [#allocation10], 16
        %v1197 = vld [vmem:[%s1196] sm:$0xf]
        %v1198 = vld [vmem:[%s1196 + $0x4] sm:$0xf]
        %v1199 = vld [vmem:[%s1196 + $0x8] sm:$0xf]
        %v1200 = vld [vmem:[%s1196 + $0xc] sm:$0xf]
        %v1205 = vunpack.c.l.b16 %v1197
        %v1206 = vunpack.c.l.b16 %v1198
        %v1207 = vunpack.c.l.b16 %v1199
        %v1208 = vunpack.c.l.b16 %v1200
        %v1209 = vpack.c.b16 %v1206, %v1205
        %v1210 = vpack.c.b16 %v1208, %v1207
        %v1214 = vsel %vm932, %v1195, 0
        %1216 = vmatprep.subr.bf16.mxu0 0
        %1217 = vmatpush1.bf16.msra.mxu0 %v1209
        %1218 = vmatprep.subr.bf16.mxu0 0
        %1219 = vmatpush1.bf16.msra.mxu0 %v1210
        %1220 = vmatprep.subr.bf16.mxu0 0
        %1221 = vmatpush1.bf16.msra.mxu0 0
        %1222 = vmatprep.subr.bf16.mxu0 0
        %1223 = vmatpush1.bf16.msra.mxu0 0
        %1224 = vmatprep.subr.bf16.mxu0 0
        %1225 = vmatpush1.bf16.msra.mxu0 0
        %1226 = vmatprep.subr.bf16.mxu0 0
        %1227 = vmatpush1.bf16.msra.mxu0 0
        %1228 = vmatprep.subr.bf16.mxu0 0
        %1229 = vmatpush1.bf16.msra.mxu0 0
        %1230 = vmatprep.subr.bf16.mxu0 0
        %1231 = vmatpush1.bf16.msra.mxu0 0
        %1232 = vmatprep.subr.bf16.mxu0 0
        %1233 = vmatpush1.bf16.msra.mxu0 0
        %1234 = vmatprep.subr.bf16.mxu0 0
        %1235 = vmatpush1.bf16.msra.mxu0 0
        %1236 = vmatprep.subr.bf16.mxu0 0
        %1237 = vmatpush1.bf16.msra.mxu0 0
        %1238 = vmatprep.subr.bf16.mxu0 0
        %1239 = vmatpush1.bf16.msra.mxu0 0
        %1240 = vmatprep.subr.bf16.mxu0 0
        %1241 = vmatpush1.bf16.msra.mxu0 0
        %1242 = vmatprep.subr.bf16.mxu0 0
        %1243 = vmatpush1.bf16.msra.mxu0 0
        %1244 = vmatprep.subr.bf16.mxu0 0
        %1245 = vmatpush1.bf16.msra.mxu0 0
        %1246 = vmatprep.subr.bf16.mxu0 0
        %1247 = vmatpush1.bf16.msra.mxu0 0
        %1248 = vmatprep.mubr.bf16.mxu0 0
        %1249 = vmatmul.mubr.bf16.gmra.mrb[0].mxu0 %v1214
        %v1250 = vpop.f32.mrb[0].mxu0
        %v1251 = vadd.f32 0.0, %v1250
        %v1252 = vpop.f32.mrb[0].mxu0
        %v1253 = vpop.f32.mrb[0].mxu0
        %v1254 = vpop.f32.mrb[0].mxu0
        %1255 = vdwg.mxu0
        %v1260 = vunpack.c.l.b16 %v1040
        %v1261 = vunpack.c.l.b16 %v1041
        %v1262 = vunpack.c.l.b16 %v1042
        %v1263 = vunpack.c.l.b16 %v1043
        %v1264 = vpack.c.b16 %v1261, %v1260
        %v1265 = vpack.c.b16 %v1263, %v1262
        %v1269 = vsel %vm932, %v1039, 0
        %1271 = vmatprep.subr.bf16.mxu0 0
        %1272 = vmatpush1.bf16.msra.mxu0 %v1264
        %1273 = vmatprep.subr.bf16.mxu0 0
        %1274 = vmatpush1.bf16.msra.mxu0 %v1265
        %1275 = vmatprep.subr.bf16.mxu0 0
        %1276 = vmatpush1.bf16.msra.mxu0 0
        %1277 = vmatprep.subr.bf16.mxu0 0
        %1278 = vmatpush1.bf16.msra.mxu0 0
        %1279 = vmatprep.subr.bf16.mxu0 0
        %1280 = vmatpush1.bf16.msra.mxu0 0
        %1281 = vmatprep.subr.bf16.mxu0 0
        %1282 = vmatpush1.bf16.msra.mxu0 0
        %1283 = vmatprep.subr.bf16.mxu0 0
        %1284 = vmatpush1.bf16.msra.mxu0 0
        %1285 = vmatprep.subr.bf16.mxu0 0
        %1286 = vmatpush1.bf16.msra.mxu0 0
        %1287 = vmatprep.subr.bf16.mxu0 0
        %1288 = vmatpush1.bf16.msra.mxu0 0
        %1289 = vmatprep.subr.bf16.mxu0 0
        %1290 = vmatpush1.bf16.msra.mxu0 0
        %1291 = vmatprep.subr.bf16.mxu0 0
        %1292 = vmatpush1.bf16.msra.mxu0 0
        %1293 = vmatprep.subr.bf16.mxu0 0
        %1294 = vmatpush1.bf16.msra.mxu0 0
        %1295 = vmatprep.subr.bf16.mxu0 0
        %1296 = vmatpush1.bf16.msra.mxu0 0
        %1297 = vmatprep.subr.bf16.mxu0 0
        %1298 = vmatpush1.bf16.msra.mxu0 0
        %1299 = vmatprep.subr.bf16.mxu0 0
        %1300 = vmatpush1.bf16.msra.mxu0 0
        %1301 = vmatprep.subr.bf16.mxu0 0
        %1302 = vmatpush1.bf16.msra.mxu0 0
        %1303 = vmatprep.mubr.bf16.mxu0 0
        %1304 = vmatmul.mubr.bf16.gmra.mrb[0].mxu0 %v1269
        %v1305 = vpop.f32.mrb[0].mxu0
        %v1306 = vadd.f32 %v1251, %v1305
        %v1307 = vpop.f32.mrb[0].mxu0
        %v1308 = vpop.f32.mrb[0].mxu0
        %v1309 = vpop.f32.mrb[0].mxu0
        %1310 = vdwg.mxu0
        %1311 = vrot.lane.b32.xlu0 %v902, 48
        %v1312 = vpop.permute.xlu0 %1311
        %1314 = vrot.lane.b32.xlu0 %v675, 80
        %v1315 = vpop.permute.xlu0 %1314
        %v1317 = vsel %vm911, %v1312, %v1315
        %1318 = vrot.lane.b32.xlu0 %v891, 64
        %v1319 = vpop.permute.xlu0 %1318
        %v1321 = vmul.f32 %v675, %v1319
        %v1322 = vmul.f32 %v1317, %v893
        %1324 = vrot.lane.b32.xlu0 %v1322, 64
        %v1325 = vpop.permute.xlu0 %1324
        %v1327 = vadd.f32 %v1321, %v1325
        %v1328 = vpack.c.bf16 %v1327, %v1327
        %1329 = vrot.lane.b32.xlu0 %v917, 48
        %v1330 = vpop.permute.xlu0 %1329
        %1332 = vrot.lane.b32.xlu0 %v779, 80
        %v1333 = vpop.permute.xlu0 %1332
        %v1335 = vsel %vm911, %v1330, %v1333
        %1336 = vrot.lane.b32.xlu0 %v888, 64
        %v1337 = vpop.permute.xlu0 %1336
        %v1339 = vmul.f32 %v779, %v1337
        %v1340 = vmul.f32 %v1335, %v889
        %1342 = vrot.lane.b32.xlu0 %v1340, 64
        %v1343 = vpop.permute.xlu0 %1342
        %v1345 = vadd.f32 %v1339, %v1343
        %v1346 = vpack.c.bf16 %v1345, %v1345
        %1348 = vrot.lane.b32.xlu0 %v1328, 64
        %v1349 = vpop.permute.xlu0 %1348
        %1351 = vrot.lane.b32.xlu0 %v1346, 64
        %v1352 = vpop.permute.xlu0 %1351
        %v1354 = vsel %vm932, %v1349, 0
        %v1357 = vsel %vm932, %v1352, 0
        %1359 = vmatprep.subr.bf16.mxu0 0
        %1360 = vmatpush1.bf16.xpose.msra.mxu0 %v1357
        %1361 = vmatprep.subr.bf16.mxu0 0
        %1362 = vmatpush1.bf16.xpose.msra.mxu0 0
        %1363 = vmatprep.subr.bf16.mxu0 0
        %1364 = vmatpush1.bf16.xpose.msra.mxu0 0
        %1365 = vmatprep.subr.bf16.mxu0 0
        %1366 = vmatpush1.bf16.xpose.msra.mxu0 0
        %1367 = vmatprep.subr.bf16.mxu0 0
        %1368 = vmatpush1.bf16.xpose.msra.mxu0 0
        %1369 = vmatprep.subr.bf16.mxu0 0
        %1370 = vmatpush1.bf16.xpose.msra.mxu0 0
        %1371 = vmatprep.subr.bf16.mxu0 0
        %1372 = vmatpush1.bf16.xpose.msra.mxu0 0
        %1373 = vmatprep.subr.bf16.mxu0 0
        %1374 = vmatpush1.bf16.xpose.msra.mxu0 0
        %1375 = vmatprep.subr.bf16.mxu0 0
        %1376 = vmatpush1.bf16.xpose.msra.mxu0 0
        %1377 = vmatprep.subr.bf16.mxu0 0
        %1378 = vmatpush1.bf16.xpose.msra.mxu0 0
        %1379 = vmatprep.subr.bf16.mxu0 0
        %1380 = vmatpush1.bf16.xpose.msra.mxu0 0
        %1381 = vmatprep.subr.bf16.mxu0 0
        %1382 = vmatpush1.bf16.xpose.msra.mxu0 0
        %1383 = vmatprep.subr.bf16.mxu0 0
        %1384 = vmatpush1.bf16.xpose.msra.mxu0 0
        %1385 = vmatprep.subr.bf16.mxu0 0
        %1386 = vmatpush1.bf16.xpose.msra.mxu0 0
        %1387 = vmatprep.subr.bf16.mxu0 0
        %1388 = vmatpush1.bf16.xpose.msra.mxu0 0
        %1389 = vmatprep.subr.bf16.mxu0 0
        %1390 = vmatpush1.bf16.xpose.msra.mxu0 0
        %1391 = vmatprep.mubr.bf16.mxu0 0
        %1392 = vmatmul.mubr.bf16.gmra.mrb[0].mxu0 %v1354
        %v1393 = vpop.f32.mrb[0].mxu0
        %v1394 = vadd.f32 %v901, %v1393
        %v1395 = vpop.f32.mrb[0].mxu0
        %v1396 = vpop.f32.mrb[0].mxu0
        %v1397 = vpop.f32.mrb[0].mxu0
        %1398 = vdwg.mxu0
        %v1399 = vsel %vm979, %v1394, -inf
        %1400 = vmax.xlane.f32.xlu0 %v1399
        %v1401 = vpop.xlane.xlu0 %1400
        %v1402 = vsub.f32 %v1394, %v1401
        %v1403 = vmul.f32 %v1402, 1.442695
        %v1404 = vpow.pop %v1403
        %v1405 = vsel %vm979, %v1404, 0.0
        %1406 = vadd.xlane.f32.xlu0 %v1405
        %v1407 = vpop.xlane.xlu0 %1406
        %v1408 = vpack.c.bf16 %v1404, %v1404
        %1409 = vrot.lane.b32.xlu0 %v931, 64
        %v1410 = vpop.permute.xlu0 %1409
        %v1412 = vsel %vm979, %v1408, 0
        %v1415 = vsel %vm993, %v1410, 0
        %1417 = vmatprep.subr.bf16.mxu0 0
        %1418 = vmatpush1.bf16.msra.mxu0 %v1415
        %1419 = vmatprep.subr.bf16.mxu0 0
        %1420 = vmatpush1.bf16.msra.mxu0 0
        %1421 = vmatprep.subr.bf16.mxu0 0
        %1422 = vmatpush1.bf16.msra.mxu0 0
        %1423 = vmatprep.subr.bf16.mxu0 0
        %1424 = vmatpush1.bf16.msra.mxu0 0
        %1425 = vmatprep.subr.bf16.mxu0 0
        %1426 = vmatpush1.bf16.msra.mxu0 0
        %1427 = vmatprep.subr.bf16.mxu0 0
        %1428 = vmatpush1.bf16.msra.mxu0 0
        %1429 = vmatprep.subr.bf16.mxu0 0
        %1430 = vmatpush1.bf16.msra.mxu0 0
        %1431 = vmatprep.subr.bf16.mxu0 0
        %1432 = vmatpush1.bf16.msra.mxu0 0
        %1433 = vmatprep.subr.bf16.mxu0 0
        %1434 = vmatpush1.bf16.msra.mxu0 0
        %1435 = vmatprep.subr.bf16.mxu0 0
        %1436 = vmatpush1.bf16.msra.mxu0 0
        %1437 = vmatprep.subr.bf16.mxu0 0
        %1438 = vmatpush1.bf16.msra.mxu0 0
        %1439 = vmatprep.subr.bf16.mxu0 0
        %1440 = vmatpush1.bf16.msra.mxu0 0
        %1441 = vmatprep.subr.bf16.mxu0 0
        %1442 = vmatpush1.bf16.msra.mxu0 0
        %1443 = vmatprep.subr.bf16.mxu0 0
        %1444 = vmatpush1.bf16.msra.mxu0 0
        %1445 = vmatprep.subr.bf16.mxu0 0
        %1446 = vmatpush1.bf16.msra.mxu0 0
        %1447 = vmatprep.subr.bf16.mxu0 0
        %1448 = vmatpush1.bf16.msra.mxu0 0
        %1449 = vmatprep.mubr.bf16.mxu0 0
        %1450 = vmatmul.mubr.bf16.gmra.mrb[0].mxu0 %v1412
        %v1451 = vpop.f32.mrb[0].mxu0
        %v1452 = vadd.f32 0.0, %v1451
        %v1453 = vpop.f32.mrb[0].mxu0
        %v1454 = vpop.f32.mrb[0].mxu0
        %v1455 = vpop.f32.mrb[0].mxu0
        %1456 = vdwg.mxu0
        %v1457 = vrcp.pop %v1407
        %v1458 = vmul.f32 %v1452, %v1457
        %v1459 = vpack.c.bf16 %v1458, %v1458
        %s1460 = scalar_lea.vmem [#allocation10], 32
        %v1461 = vld [vmem:[%s1460] sm:$0xf]
        %v1462 = vld [vmem:[%s1460 + $0x4] sm:$0xf]
        %v1463 = vld [vmem:[%s1460 + $0x8] sm:$0xf]
        %v1464 = vld [vmem:[%s1460 + $0xc] sm:$0xf]
        %v1469 = vunpack.c.l.b16 %v1461
        %v1470 = vunpack.c.l.b16 %v1462
        %v1471 = vunpack.c.l.b16 %v1463
        %v1472 = vunpack.c.l.b16 %v1464
        %v1473 = vpack.c.b16 %v1470, %v1469
        %v1474 = vpack.c.b16 %v1472, %v1471
        %v1478 = vsel %vm932, %v1459, 0
        %1480 = vmatprep.subr.bf16.mxu0 0
        %1481 = vmatpush1.bf16.msra.mxu0 %v1473
        %1482 = vmatprep.subr.bf16.mxu0 0
        %1483 = vmatpush1.bf16.msra.mxu0 %v1474
        %1484 = vmatprep.subr.bf16.mxu0 0
        %1485 = vmatpush1.bf16.msra.mxu0 0
        %1486 = vmatprep.subr.bf16.mxu0 0
        %1487 = vmatpush1.bf16.msra.mxu0 0
        %1488 = vmatprep.subr.bf16.mxu0 0
        %1489 = vmatpush1.bf16.msra.mxu0 0
        %1490 = vmatprep.subr.bf16.mxu0 0
        %1491 = vmatpush1.bf16.msra.mxu0 0
        %1492 = vmatprep.subr.bf16.mxu0 0
        %1493 = vmatpush1.bf16.msra.mxu0 0
        %1494 = vmatprep.subr.bf16.mxu0 0
        %1495 = vmatpush1.bf16.msra.mxu0 0
        %1496 = vmatprep.subr.bf16.mxu0 0
        %1497 = vmatpush1.bf16.msra.mxu0 0
        %1498 = vmatprep.subr.bf16.mxu0 0
        %1499 = vmatpush1.bf16.msra.mxu0 0
        %1500 = vmatprep.subr.bf16.mxu0 0
        %1501 = vmatpush1.bf16.msra.mxu0 0
        %1502 = vmatprep.subr.bf16.mxu0 0
        %1503 = vmatpush1.bf16.msra.mxu0 0
        %1504 = vmatprep.subr.bf16.mxu0 0
        %1505 = vmatpush1.bf16.msra.mxu0 0
        %1506 = vmatprep.subr.bf16.mxu0 0
        %1507 = vmatpush1.bf16.msra.mxu0 0
        %1508 = vmatprep.subr.bf16.mxu0 0
        %1509 = vmatpush1.bf16.msra.mxu0 0
        %1510 = vmatprep.subr.bf16.mxu0 0
        %1511 = vmatpush1.bf16.msra.mxu0 0
        %1512 = vmatprep.mubr.bf16.mxu0 0
        %1513 = vmatmul.mubr.bf16.gmra.mrb[0].mxu0 %v1478
        %v1514 = vpop.f32.mrb[0].mxu0
        %v1515 = vadd.f32 0.0, %v1514
        %v1516 = vpop.f32.mrb[0].mxu0
        %v1517 = vpop.f32.mrb[0].mxu0
        %v1518 = vpop.f32.mrb[0].mxu0
        %1519 = vdwg.mxu0
        %v1520 = vadd.f32 %v1306, %v1515
        %1521 = vrot.lane.b32.xlu0 %v902, 16
        %v1522 = vpop.permute.xlu0 %1521
        %1524 = vrot.lane.b32.xlu0 %v675, 48
        %v1525 = vpop.permute.xlu0 %1524
        %v1527 = vsel %vm911, %v1522, %v1525
        %1528 = vrot.lane.b32.xlu0 %v891, 96
        %v1529 = vpop.permute.xlu0 %1528
        %v1531 = vmul.f32 %v675, %v1529
        %v1532 = vmul.f32 %v1527, %v893
        %1534 = vrot.lane.b32.xlu0 %v1532, 96
        %v1535 = vpop.permute.xlu0 %1534
        %v1537 = vadd.f32 %v1531, %v1535
        %v1538 = vpack.c.bf16 %v1537, %v1537
        %1539 = vrot.lane.b32.xlu0 %v917, 16
        %v1540 = vpop.permute.xlu0 %1539
        %1542 = vrot.lane.b32.xlu0 %v779, 48
        %v1543 = vpop.permute.xlu0 %1542
        %v1545 = vsel %vm911, %v1540, %v1543
        %1546 = vrot.lane.b32.xlu0 %v888, 96
        %v1547 = vpop.permute.xlu0 %1546
        %v1549 = vmul.f32 %v779, %v1547
        %v1550 = vmul.f32 %v1545, %v889
        %1552 = vrot.lane.b32.xlu0 %v1550, 96
        %v1553 = vpop.permute.xlu0 %1552
        %v1555 = vadd.f32 %v1549, %v1553
        %v1556 = vpack.c.bf16 %v1555, %v1555
        %1558 = vrot.lane.b32.xlu0 %v1538, 32
        %v1559 = vpop.permute.xlu0 %1558
        %1561 = vrot.lane.b32.xlu0 %v1556, 32
        %v1562 = vpop.permute.xlu0 %1561
        %v1564 = vsel %vm932, %v1559, 0
        %v1567 = vsel %vm932, %v1562, 0
        %1569 = vmatprep.subr.bf16.mxu0 0
        %1570 = vmatpush1.bf16.xpose.msra.mxu0 %v1567
        %1571 = vmatprep.subr.bf16.mxu0 0
        %1572 = vmatpush1.bf16.xpose.msra.mxu0 0
        %1573 = vmatprep.subr.bf16.mxu0 0
        %1574 = vmatpush1.bf16.xpose.msra.mxu0 0
        %1575 = vmatprep.subr.bf16.mxu0 0
        %1576 = vmatpush1.bf16.xpose.msra.mxu0 0
        %1577 = vmatprep.subr.bf16.mxu0 0
        %1578 = vmatpush1.bf16.xpose.msra.mxu0 0
        %1579 = vmatprep.subr.bf16.mxu0 0
        %1580 = vmatpush1.bf16.xpose.msra.mxu0 0
        %1581 = vmatprep.subr.bf16.mxu0 0
        %1582 = vmatpush1.bf16.xpose.msra.mxu0 0
        %1583 = vmatprep.subr.bf16.mxu0 0
        %1584 = vmatpush1.bf16.xpose.msra.mxu0 0
        %1585 = vmatprep.subr.bf16.mxu0 0
        %1586 = vmatpush1.bf16.xpose.msra.mxu0 0
        %1587 = vmatprep.subr.bf16.mxu0 0
        %1588 = vmatpush1.bf16.xpose.msra.mxu0 0
        %1589 = vmatprep.subr.bf16.mxu0 0
        %1590 = vmatpush1.bf16.xpose.msra.mxu0 0
        %1591 = vmatprep.subr.bf16.mxu0 0
        %1592 = vmatpush1.bf16.xpose.msra.mxu0 0
        %1593 = vmatprep.subr.bf16.mxu0 0
        %1594 = vmatpush1.bf16.xpose.msra.mxu0 0
        %1595 = vmatprep.subr.bf16.mxu0 0
        %1596 = vmatpush1.bf16.xpose.msra.mxu0 0
        %1597 = vmatprep.subr.bf16.mxu0 0
        %1598 = vmatpush1.bf16.xpose.msra.mxu0 0
        %1599 = vmatprep.subr.bf16.mxu0 0
        %1600 = vmatpush1.bf16.xpose.msra.mxu0 0
        %1601 = vmatprep.mubr.bf16.mxu0 0
        %1602 = vmatmul.mubr.bf16.gmra.mrb[0].mxu0 %v1564
        %v1603 = vpop.f32.mrb[0].mxu0
        %v1604 = vadd.f32 %v901, %v1603
        %v1605 = vpop.f32.mrb[0].mxu0
        %v1606 = vpop.f32.mrb[0].mxu0
        %v1607 = vpop.f32.mrb[0].mxu0
        %1608 = vdwg.mxu0
        %v1609 = vsel %vm979, %v1604, -inf
        %1610 = vmax.xlane.f32.xlu0 %v1609
        %v1611 = vpop.xlane.xlu0 %1610
        %v1612 = vsub.f32 %v1604, %v1611
        %v1613 = vmul.f32 %v1612, 1.442695
        %v1614 = vpow.pop %v1613
        %v1615 = vsel %vm979, %v1614, 0.0
        %1616 = vadd.xlane.f32.xlu0 %v1615
        %v1617 = vpop.xlane.xlu0 %1616
        %v1618 = vpack.c.bf16 %v1614, %v1614
        %1619 = vrot.lane.b32.xlu0 %v931, 32
        %v1620 = vpop.permute.xlu0 %1619
        %v1622 = vsel %vm979, %v1618, 0
        %v1625 = vsel %vm993, %v1620, 0
        %1627 = vmatprep.subr.bf16.mxu0 0
        %1628 = vmatpush1.bf16.msra.mxu0 %v1625
        %1629 = vmatprep.subr.bf16.mxu0 0
        %1630 = vmatpush1.bf16.msra.mxu0 0
        %1631 = vmatprep.subr.bf16.mxu0 0
        %1632 = vmatpush1.bf16.msra.mxu0 0
        %1633 = vmatprep.subr.bf16.mxu0 0
        %1634 = vmatpush1.bf16.msra.mxu0 0
        %1635 = vmatprep.subr.bf16.mxu0 0
        %1636 = vmatpush1.bf16.msra.mxu0 0
        %1637 = vmatprep.subr.bf16.mxu0 0
        %1638 = vmatpush1.bf16.msra.mxu0 0
        %1639 = vmatprep.subr.bf16.mxu0 0
        %1640 = vmatpush1.bf16.msra.mxu0 0
        %1641 = vmatprep.subr.bf16.mxu0 0
        %1642 = vmatpush1.bf16.msra.mxu0 0
        %1643 = vmatprep.subr.bf16.mxu0 0
        %1644 = vmatpush1.bf16.msra.mxu0 0
        %1645 = vmatprep.subr.bf16.mxu0 0
        %1646 = vmatpush1.bf16.msra.mxu0 0
        %1647 = vmatprep.subr.bf16.mxu0 0
        %1648 = vmatpush1.bf16.msra.mxu0 0
        %1649 = vmatprep.subr.bf16.mxu0 0
        %1650 = vmatpush1.bf16.msra.mxu0 0
        %1651 = vmatprep.subr.bf16.mxu0 0
        %1652 = vmatpush1.bf16.msra.mxu0 0
        %1653 = vmatprep.subr.bf16.mxu0 0
        %1654 = vmatpush1.bf16.msra.mxu0 0
        %1655 = vmatprep.subr.bf16.mxu0 0
        %1656 = vmatpush1.bf16.msra.mxu0 0
        %1657 = vmatprep.subr.bf16.mxu0 0
        %1658 = vmatpush1.bf16.msra.mxu0 0
        %1659 = vmatprep.mubr.bf16.mxu0 0
        %1660 = vmatmul.mubr.bf16.gmra.mrb[0].mxu0 %v1622
        %v1661 = vpop.f32.mrb[0].mxu0
        %v1662 = vadd.f32 0.0, %v1661
        %v1663 = vpop.f32.mrb[0].mxu0
        %v1664 = vpop.f32.mrb[0].mxu0
        %v1665 = vpop.f32.mrb[0].mxu0
        %1666 = vdwg.mxu0
        %v1667 = vrcp.pop %v1617
        %v1668 = vmul.f32 %v1662, %v1667
        %v1669 = vpack.c.bf16 %v1668, %v1668
        %s1670 = scalar_lea.vmem [#allocation10], 48
        %v1671 = vld [vmem:[%s1670] sm:$0xf]
        %v1672 = vld [vmem:[%s1670 + $0x4] sm:$0xf]
        %v1673 = vld [vmem:[%s1670 + $0x8] sm:$0xf]
        %v1674 = vld [vmem:[%s1670 + $0xc] sm:$0xf]
        %v1679 = vunpack.c.l.b16 %v1671
        %v1680 = vunpack.c.l.b16 %v1672
        %v1681 = vunpack.c.l.b16 %v1673
        %v1682 = vunpack.c.l.b16 %v1674
        %v1683 = vpack.c.b16 %v1680, %v1679
        %v1684 = vpack.c.b16 %v1682, %v1681
        %v1688 = vsel %vm932, %v1669, 0
        %1690 = vmatprep.subr.bf16.mxu0 0
        %1691 = vmatpush1.bf16.msra.mxu0 %v1683
        %1692 = vmatprep.subr.bf16.mxu0 0
        %1693 = vmatpush1.bf16.msra.mxu0 %v1684
        %1694 = vmatprep.subr.bf16.mxu0 0
        %1695 = vmatpush1.bf16.msra.mxu0 0
        %1696 = vmatprep.subr.bf16.mxu0 0
        %1697 = vmatpush1.bf16.msra.mxu0 0
        %1698 = vmatprep.subr.bf16.mxu0 0
        %1699 = vmatpush1.bf16.msra.mxu0 0
        %1700 = vmatprep.subr.bf16.mxu0 0
        %1701 = vmatpush1.bf16.msra.mxu0 0
        %1702 = vmatprep.subr.bf16.mxu0 0
        %1703 = vmatpush1.bf16.msra.mxu0 0
        %1704 = vmatprep.subr.bf16.mxu0 0
        %1705 = vmatpush1.bf16.msra.mxu0 0
        %1706 = vmatprep.subr.bf16.mxu0 0
        %1707 = vmatpush1.bf16.msra.mxu0 0
        %1708 = vmatprep.subr.bf16.mxu0 0
        %1709 = vmatpush1.bf16.msra.mxu0 0
        %1710 = vmatprep.subr.bf16.mxu0 0
        %1711 = vmatpush1.bf16.msra.mxu0 0
        %1712 = vmatprep.subr.bf16.mxu0 0
        %1713 = vmatpush1.bf16.msra.mxu0 0
        %1714 = vmatprep.subr.bf16.mxu0 0
        %1715 = vmatpush1.bf16.msra.mxu0 0
        %1716 = vmatprep.subr.bf16.mxu0 0
        %1717 = vmatpush1.bf16.msra.mxu0 0
        %1718 = vmatprep.subr.bf16.mxu0 0
        %1719 = vmatpush1.bf16.msra.mxu0 0
        %1720 = vmatprep.subr.bf16.mxu0 0
        %1721 = vmatpush1.bf16.msra.mxu0 0
        %1722 = vmatprep.mubr.bf16.mxu0 0
        %1723 = vmatmul.mubr.bf16.gmra.mrb[0].mxu0 %v1688
        %v1724 = vpop.f32.mrb[0].mxu0
        %v1725 = vadd.f32 0.0, %v1724
        %v1726 = vpop.f32.mrb[0].mxu0
        %v1727 = vpop.f32.mrb[0].mxu0
        %v1728 = vpop.f32.mrb[0].mxu0
        %1729 = vdwg.mxu0
        %v1730 = vadd.f32 %v1520, %v1725
        %v1731 = vadd.f32 %v549, %v1730
        %v1732 = vld [vmem:[%s6] sm:$0x1]
        %v1733 = vmul.f32 %v1731, %v1731
        %1734 = vadd.xlane.f32.xlu0 %v1733
        %v1735 = vpop.xlane.xlu0 %1734
        %v1736 = vmul.f32 %v1735, %v554
        %v1737 = vadd.f32 %v1736, 1e-05
        %v1738 = vrsqrt.pop %v1737
        %v1739 = vmul.f32 %v1731, %v1738
        %v1741 = vlaneseq
        %v1742 = vshrl.u32 %v1741, 7
        %v1743 = vsub.s32 0, %v1742
        %v1744 = vrot.slane %v1732, %v1743
        %v1746 = vmul.f32 %v1739, %v1744
        %v1747 = vpack.c.bf16 %v1746, %v1746
        %v1748 = vld [vmem:[#allocation11] sm:$0xff]
        %v1749 = vld [vmem:[#allocation11 + $0x8] sm:$0xff]
        %v1750 = vld [vmem:[#allocation11 + $0x10] sm:$0xff]
        %v1751 = vld [vmem:[#allocation11 + $0x18] sm:$0xff]
        %v1752 = vld [vmem:[#allocation11 + $0x20] sm:$0xff]
        %v1753 = vld [vmem:[#allocation11 + $0x28] sm:$0xff]
        %v1754 = vld [vmem:[#allocation11 + $0x30] sm:$0xff]
        %v1755 = vld [vmem:[#allocation11 + $0x38] sm:$0xff]
        %v1756 = vld [vmem:[#allocation11 + $0x40] sm:$0xff]
        %v1757 = vld [vmem:[#allocation11 + $0x48] sm:$0xff]
        %v1758 = vld [vmem:[#allocation11 + $0x50] sm:$0xff]
        %v1759 = vld [vmem:[#allocation11 + $0x58] sm:$0xff]
        %v1760 = vld [vmem:[#allocation11 + $0x60] sm:$0xff]
        %v1761 = vld [vmem:[#allocation11 + $0x68] sm:$0xff]
        %v1762 = vld [vmem:[#allocation11 + $0x70] sm:$0xff]
        %v1763 = vld [vmem:[#allocation11 + $0x78] sm:$0xff]
        %v1780 = vunpack.c.l.b16 %v1748
        %v1781 = vunpack.c.h.b16 %v1748
        %v1782 = vunpack.c.l.b16 %v1749
        %v1783 = vunpack.c.h.b16 %v1749
        %v1784 = vunpack.c.l.b16 %v1750
        %v1785 = vunpack.c.h.b16 %v1750
        %v1786 = vunpack.c.l.b16 %v1751
        %v1787 = vunpack.c.h.b16 %v1751
        %v1788 = vunpack.c.l.b16 %v1752
        %v1789 = vunpack.c.h.b16 %v1752
        %v1790 = vunpack.c.l.b16 %v1753
        %v1791 = vunpack.c.h.b16 %v1753
        %v1792 = vunpack.c.l.b16 %v1754
        %v1793 = vunpack.c.h.b16 %v1754
        %v1794 = vunpack.c.l.b16 %v1755
        %v1795 = vunpack.c.h.b16 %v1755
        %v1796 = vunpack.c.l.b16 %v1756
        %v1797 = vunpack.c.h.b16 %v1756
        %v1798 = vunpack.c.l.b16 %v1757
        %v1799 = vunpack.c.h.b16 %v1757
        %v1800 = vunpack.c.l.b16 %v1758
        %v1801 = vunpack.c.h.b16 %v1758
        %v1802 = vunpack.c.l.b16 %v1759
        %v1803 = vunpack.c.h.b16 %v1759
        %v1804 = vunpack.c.l.b16 %v1760
        %v1805 = vunpack.c.h.b16 %v1760
        %v1806 = vunpack.c.l.b16 %v1761
        %v1807 = vunpack.c.h.b16 %v1761
        %v1808 = vunpack.c.l.b16 %v1762
        %v1809 = vunpack.c.h.b16 %v1762
        %v1810 = vunpack.c.l.b16 %v1763
        %v1811 = vunpack.c.h.b16 %v1763
        %v1812 = vpack.c.b16 %v1782, %v1780
        %v1813 = vpack.c.b16 %v1783, %v1781
        %v1814 = vpack.c.b16 %v1786, %v1784
        %v1815 = vpack.c.b16 %v1787, %v1785
        %v1816 = vpack.c.b16 %v1790, %v1788
        %v1817 = vpack.c.b16 %v1791, %v1789
        %v1818 = vpack.c.b16 %v1794, %v1792
        %v1819 = vpack.c.b16 %v1795, %v1793
        %v1820 = vpack.c.b16 %v1798, %v1796
        %v1821 = vpack.c.b16 %v1799, %v1797
        %v1822 = vpack.c.b16 %v1802, %v1800
        %v1823 = vpack.c.b16 %v1803, %v1801
        %v1824 = vpack.c.b16 %v1806, %v1804
        %v1825 = vpack.c.b16 %v1807, %v1805
        %v1826 = vpack.c.b16 %v1810, %v1808
        %v1827 = vpack.c.b16 %v1811, %v1809
        %1844 = vmatprep.subr.bf16.mxu0 %v1813
        %1845 = vmatpush1.bf16.msra.mxu0 %v1812
        %1846 = vmatprep.subr.bf16.mxu0 %v1815
        %1847 = vmatpush1.bf16.msra.mxu0 %v1814
        %1848 = vmatprep.subr.bf16.mxu0 %v1817
        %1849 = vmatpush1.bf16.msra.mxu0 %v1816
        %1850 = vmatprep.subr.bf16.mxu0 %v1819
        %1851 = vmatpush1.bf16.msra.mxu0 %v1818
        %1852 = vmatprep.subr.bf16.mxu0 %v1821
        %1853 = vmatpush1.bf16.msra.mxu0 %v1820
        %1854 = vmatprep.subr.bf16.mxu0 %v1823
        %1855 = vmatpush1.bf16.msra.mxu0 %v1822
        %1856 = vmatprep.subr.bf16.mxu0 %v1825
        %1857 = vmatpush1.bf16.msra.mxu0 %v1824
        %1858 = vmatprep.subr.bf16.mxu0 %v1827
        %1859 = vmatpush1.bf16.msra.mxu0 %v1826
        %1860 = vmatprep.subr.bf16.mxu0 0
        %1861 = vmatpush1.bf16.msra.mxu0 0
        %1862 = vmatprep.subr.bf16.mxu0 0
        %1863 = vmatpush1.bf16.msra.mxu0 0
        %1864 = vmatprep.subr.bf16.mxu0 0
        %1865 = vmatpush1.bf16.msra.mxu0 0
        %1866 = vmatprep.subr.bf16.mxu0 0
        %1867 = vmatpush1.bf16.msra.mxu0 0
        %1868 = vmatprep.subr.bf16.mxu0 0
        %1869 = vmatpush1.bf16.msra.mxu0 0
        %1870 = vmatprep.subr.bf16.mxu0 0
        %1871 = vmatpush1.bf16.msra.mxu0 0
        %1872 = vmatprep.subr.bf16.mxu0 0
        %1873 = vmatpush1.bf16.msra.mxu0 0
        %1874 = vmatprep.subr.bf16.mxu0 0
        %1875 = vmatpush1.bf16.msra.mxu0 0
        %1876 = vmatprep.mubr.bf16.mxu0 0
        %1877 = vmatmul.mubr.bf16.gmra.mrb[0].mxu0 %v1747
        %v1878 = vpop.f32.mrb[0].mxu0
        %v1879 = vadd.f32 0.0, %v1878
        %v1880 = vpop.f32.mrb[0].mxu0
        %v1881 = vadd.f32 0.0, %v1880
        %v1882 = vpop.f32.mrb[0].mxu0
        %v1883 = vpop.f32.mrb[0].mxu0
        %1884 = vdwg.mxu0
        %v1885 = vld [vmem:[#allocation13] sm:$0xff]
        %v1886 = vld [vmem:[#allocation13 + $0x8] sm:$0xff]
        %v1887 = vld [vmem:[#allocation13 + $0x10] sm:$0xff]
        %v1888 = vld [vmem:[#allocation13 + $0x18] sm:$0xff]
        %v1889 = vld [vmem:[#allocation13 + $0x20] sm:$0xff]
        %v1890 = vld [vmem:[#allocation13 + $0x28] sm:$0xff]
        %v1891 = vld [vmem:[#allocation13 + $0x30] sm:$0xff]
        %v1892 = vld [vmem:[#allocation13 + $0x38] sm:$0xff]
        %v1893 = vld [vmem:[#allocation13 + $0x40] sm:$0xff]
        %v1894 = vld [vmem:[#allocation13 + $0x48] sm:$0xff]
        %v1895 = vld [vmem:[#allocation13 + $0x50] sm:$0xff]
        %v1896 = vld [vmem:[#allocation13 + $0x58] sm:$0xff]
        %v1897 = vld [vmem:[#allocation13 + $0x60] sm:$0xff]
        %v1898 = vld [vmem:[#allocation13 + $0x68] sm:$0xff]
        %v1899 = vld [vmem:[#allocation13 + $0x70] sm:$0xff]
        %v1900 = vld [vmem:[#allocation13 + $0x78] sm:$0xff]
        %v1917 = vunpack.c.l.b16 %v1885
        %v1918 = vunpack.c.h.b16 %v1885
        %v1919 = vunpack.c.l.b16 %v1886
        %v1920 = vunpack.c.h.b16 %v1886
        %v1921 = vunpack.c.l.b16 %v1887
        %v1922 = vunpack.c.h.b16 %v1887
        %v1923 = vunpack.c.l.b16 %v1888
        %v1924 = vunpack.c.h.b16 %v1888
        %v1925 = vunpack.c.l.b16 %v1889
        %v1926 = vunpack.c.h.b16 %v1889
        %v1927 = vunpack.c.l.b16 %v1890
        %v1928 = vunpack.c.h.b16 %v1890
        %v1929 = vunpack.c.l.b16 %v1891
        %v1930 = vunpack.c.h.b16 %v1891
        %v1931 = vunpack.c.l.b16 %v1892
        %v1932 = vunpack.c.h.b16 %v1892
        %v1933 = vunpack.c.l.b16 %v1893
        %v1934 = vunpack.c.h.b16 %v1893
        %v1935 = vunpack.c.l.b16 %v1894
        %v1936 = vunpack.c.h.b16 %v1894
        %v1937 = vunpack.c.l.b16 %v1895
        %v1938 = vunpack.c.h.b16 %v1895
        %v1939 = vunpack.c.l.b16 %v1896
        %v1940 = vunpack.c.h.b16 %v1896
        %v1941 = vunpack.c.l.b16 %v1897
        %v1942 = vunpack.c.h.b16 %v1897
        %v1943 = vunpack.c.l.b16 %v1898
        %v1944 = vunpack.c.h.b16 %v1898
        %v1945 = vunpack.c.l.b16 %v1899
        %v1946 = vunpack.c.h.b16 %v1899
        %v1947 = vunpack.c.l.b16 %v1900
        %v1948 = vunpack.c.h.b16 %v1900
        %v1949 = vpack.c.b16 %v1919, %v1917
        %v1950 = vpack.c.b16 %v1920, %v1918
        %v1951 = vpack.c.b16 %v1923, %v1921
        %v1952 = vpack.c.b16 %v1924, %v1922
        %v1953 = vpack.c.b16 %v1927, %v1925
        %v1954 = vpack.c.b16 %v1928, %v1926
        %v1955 = vpack.c.b16 %v1931, %v1929
        %v1956 = vpack.c.b16 %v1932, %v1930
        %v1957 = vpack.c.b16 %v1935, %v1933
        %v1958 = vpack.c.b16 %v1936, %v1934
        %v1959 = vpack.c.b16 %v1939, %v1937
        %v1960 = vpack.c.b16 %v1940, %v1938
        %v1961 = vpack.c.b16 %v1943, %v1941
        %v1962 = vpack.c.b16 %v1944, %v1942
        %v1963 = vpack.c.b16 %v1947, %v1945
        %v1964 = vpack.c.b16 %v1948, %v1946
        %1981 = vmatprep.subr.bf16.mxu0 %v1950
        %1982 = vmatpush1.bf16.msra.mxu0 %v1949
        %1983 = vmatprep.subr.bf16.mxu0 %v1952
        %1984 = vmatpush1.bf16.msra.mxu0 %v1951
        %1985 = vmatprep.subr.bf16.mxu0 %v1954
        %1986 = vmatpush1.bf16.msra.mxu0 %v1953
        %1987 = vmatprep.subr.bf16.mxu0 %v1956
        %1988 = vmatpush1.bf16.msra.mxu0 %v1955
        %1989 = vmatprep.subr.bf16.mxu0 %v1958
        %1990 = vmatpush1.bf16.msra.mxu0 %v1957
        %1991 = vmatprep.subr.bf16.mxu0 %v1960
        %1992 = vmatpush1.bf16.msra.mxu0 %v1959
        %1993 = vmatprep.subr.bf16.mxu0 %v1962
        %1994 = vmatpush1.bf16.msra.mxu0 %v1961
        %1995 = vmatprep.subr.bf16.mxu0 %v1964
        %1996 = vmatpush1.bf16.msra.mxu0 %v1963
        %1997 = vmatprep.subr.bf16.mxu0 0
        %1998 = vmatpush1.bf16.msra.mxu0 0
        %1999 = vmatprep.subr.bf16.mxu0 0
        %2000 = vmatpush1.bf16.msra.mxu0 0
        %2001 = vmatprep.subr.bf16.mxu0 0
        %2002 = vmatpush1.bf16.msra.mxu0 0
        %2003 = vmatprep.subr.bf16.mxu0 0
        %2004 = vmatpush1.bf16.msra.mxu0 0
        %2005 = vmatprep.subr.bf16.mxu0 0
        %2006 = vmatpush1.bf16.msra.mxu0 0
        %2007 = vmatprep.subr.bf16.mxu0 0
        %2008 = vmatpush1.bf16.msra.mxu0 0
        %2009 = vmatprep.subr.bf16.mxu0 0
        %2010 = vmatpush1.bf16.msra.mxu0 0
        %2011 = vmatprep.subr.bf16.mxu0 0
        %2012 = vmatpush1.bf16.msra.mxu0 0
        %2013 = vmatprep.mubr.bf16.mxu0 0
        %2014 = vmatmul.mubr.bf16.gmra.mrb[0].mxu0 %v1747
        %v2015 = vpop.f32.mrb[0].mxu0
        %v2016 = vadd.f32 0.0, %v2015
        %v2017 = vpop.f32.mrb[0].mxu0
        %v2018 = vadd.f32 0.0, %v2017
        %v2019 = vpop.f32.mrb[0].mxu0
        %v2020 = vpop.f32.mrb[0].mxu0
        %2021 = vdwg.mxu0
        %v2022 = vxor.u32 %v1879, 2147483648
        %v2023 = vxor.u32 %v1881, 2147483648
        %v2024 = vmul.f32 %v2022, 1.442695
        %v2025 = vpow.pop %v2024
        %v2026 = vmul.f32 %v2023, 1.442695
        %v2027 = vpow.pop %v2026
        %v2028 = vadd.f32 %v2025, 1.0
        %v2029 = vadd.f32 %v2027, 1.0
        %v2030 = vrcp.pop %v2028
        %v2031 = vmul.f32 1.0, %v2030
        %v2032 = vrcp.pop %v2029
        %v2033 = vmul.f32 1.0, %v2032
        %v2034 = vmul.f32 %v1879, %v2031
        %v2035 = vmul.f32 %v1881, %v2033
        %v2036 = vmul.f32 %v2034, %v2016
        %v2037 = vmul.f32 %v2035, %v2018
        %v2038 = vpack.c.bf16 %v2036, %v2036
        %v2039 = vpack.c.bf16 %v2037, %v2037
        %v2040 = vld [vmem:[#allocation14] sm:$0xf]
        %v2041 = vld [vmem:[#allocation14 + $0x4] sm:$0xf]
        %v2042 = vld [vmem:[#allocation14 + $0x8] sm:$0xf]
        %v2043 = vld [vmem:[#allocation14 + $0xc] sm:$0xf]
        %v2044 = vld [vmem:[#allocation14 + $0x10] sm:$0xf]
        %v2045 = vld [vmem:[#allocation14 + $0x14] sm:$0xf]
        %v2046 = vld [vmem:[#allocation14 + $0x18] sm:$0xf]
        %v2047 = vld [vmem:[#allocation14 + $0x1c] sm:$0xf]
        %v2048 = vld [vmem:[#allocation14 + $0x20] sm:$0xf]
        %v2049 = vld [vmem:[#allocation14 + $0x24] sm:$0xf]
        %v2050 = vld [vmem:[#allocation14 + $0x28] sm:$0xf]
        %v2051 = vld [vmem:[#allocation14 + $0x2c] sm:$0xf]
        %v2052 = vld [vmem:[#allocation14 + $0x30] sm:$0xf]
        %v2053 = vld [vmem:[#allocation14 + $0x34] sm:$0xf]
        %v2054 = vld [vmem:[#allocation14 + $0x38] sm:$0xf]
        %v2055 = vld [vmem:[#allocation14 + $0x3c] sm:$0xf]
        %v2056 = vld [vmem:[#allocation14 + $0x40] sm:$0xf]
        %v2057 = vld [vmem:[#allocation14 + $0x44] sm:$0xf]
        %v2058 = vld [vmem:[#allocation14 + $0x48] sm:$0xf]
        %v2059 = vld [vmem:[#allocation14 + $0x4c] sm:$0xf]
        %v2060 = vld [vmem:[#allocation14 + $0x50] sm:$0xf]
        %v2061 = vld [vmem:[#allocation14 + $0x54] sm:$0xf]
        %v2062 = vld [vmem:[#allocation14 + $0x58] sm:$0xf]
        %v2063 = vld [vmem:[#allocation14 + $0x5c] sm:$0xf]
        %v2064 = vld [vmem:[#allocation14 + $0x60] sm:$0xf]
        %v2065 = vld [vmem:[#allocation14 + $0x64] sm:$0xf]
        %v2066 = vld [vmem:[#allocation14 + $0x68] sm:$0xf]
        %v2067 = vld [vmem:[#allocation14 + $0x6c] sm:$0xf]
        %v2068 = vld [vmem:[#allocation14 + $0x70] sm:$0xf]
        %v2069 = vld [vmem:[#allocation14 + $0x74] sm:$0xf]
        %v2070 = vld [vmem:[#allocation14 + $0x78] sm:$0xf]
        %v2071 = vld [vmem:[#allocation14 + $0x7c] sm:$0xf]
        %v2104 = vunpack.c.l.b16 %v2040
        %v2105 = vunpack.c.l.b16 %v2041
        %v2106 = vunpack.c.l.b16 %v2042
        %v2107 = vunpack.c.l.b16 %v2043
        %v2108 = vunpack.c.l.b16 %v2044
        %v2109 = vunpack.c.l.b16 %v2045
        %v2110 = vunpack.c.l.b16 %v2046
        %v2111 = vunpack.c.l.b16 %v2047
        %v2112 = vunpack.c.l.b16 %v2048
        %v2113 = vunpack.c.l.b16 %v2049
        %v2114 = vunpack.c.l.b16 %v2050
        %v2115 = vunpack.c.l.b16 %v2051
        %v2116 = vunpack.c.l.b16 %v2052
        %v2117 = vunpack.c.l.b16 %v2053
        %v2118 = vunpack.c.l.b16 %v2054
        %v2119 = vunpack.c.l.b16 %v2055
        %v2120 = vunpack.c.l.b16 %v2056
        %v2121 = vunpack.c.l.b16 %v2057
        %v2122 = vunpack.c.l.b16 %v2058
        %v2123 = vunpack.c.l.b16 %v2059
        %v2124 = vunpack.c.l.b16 %v2060
        %v2125 = vunpack.c.l.b16 %v2061
        %v2126 = vunpack.c.l.b16 %v2062
        %v2127 = vunpack.c.l.b16 %v2063
        %v2128 = vunpack.c.l.b16 %v2064
        %v2129 = vunpack.c.l.b16 %v2065
        %v2130 = vunpack.c.l.b16 %v2066
        %v2131 = vunpack.c.l.b16 %v2067
        %v2132 = vunpack.c.l.b16 %v2068
        %v2133 = vunpack.c.l.b16 %v2069
        %v2134 = vunpack.c.l.b16 %v2070
        %v2135 = vunpack.c.l.b16 %v2071
        %v2136 = vpack.c.b16 %v2105, %v2104
        %v2137 = vpack.c.b16 %v2107, %v2106
        %v2138 = vpack.c.b16 %v2109, %v2108
        %v2139 = vpack.c.b16 %v2111, %v2110
        %v2140 = vpack.c.b16 %v2113, %v2112
        %v2141 = vpack.c.b16 %v2115, %v2114
        %v2142 = vpack.c.b16 %v2117, %v2116
        %v2143 = vpack.c.b16 %v2119, %v2118
        %v2144 = vpack.c.b16 %v2121, %v2120
        %v2145 = vpack.c.b16 %v2123, %v2122
        %v2146 = vpack.c.b16 %v2125, %v2124
        %v2147 = vpack.c.b16 %v2127, %v2126
        %v2148 = vpack.c.b16 %v2129, %v2128
        %v2149 = vpack.c.b16 %v2131, %v2130
        %v2150 = vpack.c.b16 %v2133, %v2132
        %v2151 = vpack.c.b16 %v2135, %v2134
        %2168 = vmatprep.subr.bf16.mxu0 0
        %2169 = vmatpush1.bf16.msra.mxu0 %v2136
        %2170 = vmatprep.subr.bf16.mxu0 0
        %2171 = vmatpush1.bf16.msra.mxu0 %v2137
        %2172 = vmatprep.subr.bf16.mxu0 0
        %2173 = vmatpush1.bf16.msra.mxu0 %v2138
        %2174 = vmatprep.subr.bf16.mxu0 0
        %2175 = vmatpush1.bf16.msra.mxu0 %v2139
        %2176 = vmatprep.subr.bf16.mxu0 0
        %2177 = vmatpush1.bf16.msra.mxu0 %v2140
        %2178 = vmatprep.subr.bf16.mxu0 0
        %2179 = vmatpush1.bf16.msra.mxu0 %v2141
        %2180 = vmatprep.subr.bf16.mxu0 0
        %2181 = vmatpush1.bf16.msra.mxu0 %v2142
        %2182 = vmatprep.subr.bf16.mxu0 0
        %2183 = vmatpush1.bf16.msra.mxu0 %v2143
        %2184 = vmatprep.subr.bf16.mxu0 0
        %2185 = vmatpush1.bf16.msra.mxu0 %v2144
        %2186 = vmatprep.subr.bf16.mxu0 0
        %2187 = vmatpush1.bf16.msra.mxu0 %v2145
        %2188 = vmatprep.subr.bf16.mxu0 0
        %2189 = vmatpush1.bf16.msra.mxu0 %v2146
        %2190 = vmatprep.subr.bf16.mxu0 0
        %2191 = vmatpush1.bf16.msra.mxu0 %v2147
        %2192 = vmatprep.subr.bf16.mxu0 0
        %2193 = vmatpush1.bf16.msra.mxu0 %v2148
        %2194 = vmatprep.subr.bf16.mxu0 0
        %2195 = vmatpush1.bf16.msra.mxu0 %v2149
        %2196 = vmatprep.subr.bf16.mxu0 0
        %2197 = vmatpush1.bf16.msra.mxu0 %v2150
        %2198 = vmatprep.subr.bf16.mxu0 0
        %2199 = vmatpush1.bf16.msra.mxu0 %v2151
        %2200 = vmatprep.mubr.bf16.mxu0 %v2039
        %2201 = vmatmul.mubr.bf16.gmra.mrb[0].mxu0 %v2038
        %v2202 = vpop.f32.mrb[0].mxu0
        %v2203 = vadd.f32 0.0, %v2202
        %v2204 = vpop.f32.mrb[0].mxu0
        %v2205 = vpop.f32.mrb[0].mxu0
        %v2206 = vpop.f32.mrb[0].mxu0
        %2207 = vdwg.mxu0
        %v2208 = vadd.f32 %v1731, %v2203
        %2209 = vst [vmem:[%s544] sm:$0xff] %v2208
        %s2210 = sand.u32 %s312, 1
        %s2211 = scalar_lea.sflag [#allocation4], %s2210
        %s2212 = sand.u32 %s312, 1
        %s2213 = smul.addr %s2212, 8
        %s2214 = scalar_lea.vmem [#allocation16], %s2213
        // Predicated region
        $region101: #{tpu_custom_call.1} parent=67 // pred_check
          %p2215 = pneg %p322
        $region102: #{tpu_custom_call.1} parent=67 // pred_check_branch
          %2217 = sbr.rel (%p2215) target = $region104
        $region103: #{tpu_custom_call.1} parent=67 // pred_region
          %s2219 = ssub.s32 128, 128
          %2220 = vsyncadd %s2211, %s2219
          %s2221 = sadd.s32 %s38, %s37
          %s2222 = smul.addr %s2221, 128
          %s2223 = scalar_lea.hbm %s12, %s2222
          %s2225 = sshll.u32 %s2214, 4
          %s2226 = int_to_ptr.vmem [resolvable:$true] %s2225
          %2228 = dma.vmem_to_hbm [thread:$0]  %s2226, 128, %s2223, %s2211
        $region104: #{tpu_custom_call.1} parent=67 // pred_fallthru
          _
      $region68: #{tpu_custom_call.1} parent=5 // pred_fallthru
        _
      %p2229 = scmp.le.s32.totalorder 2, %s28
      // Predicated region
      $region105: #{tpu_custom_call.1} parent=5 // pred_check
        %p2230 = pneg %p2229
      $region106: #{tpu_custom_call.1} parent=5 // pred_check_branch
        %2232 = sbr.rel (%p2230) target = $region108
      $region107: #{tpu_custom_call.1} parent=5 // pred_region
        %s2233 = ssub.s32 %s28, 2
        // Predicated region
        $region109: #{tpu_custom_call.1} parent=107 // pred_check
          %p2234 = pneg %p328
        $region110: #{tpu_custom_call.1} parent=107 // pred_check_branch
          %2236 = sbr.rel (%p2234) target = $region112
        $region111: #{tpu_custom_call.1} parent=107 // pred_region
          %s2237 = sand.u32 %s313, 1
          %s2238 = scalar_lea.sflag [#allocation4], %s2237
          %s2239 = sand.u32 %s313, 1
          %s2240 = smul.addr %s2239, 8
          %s2241 = scalar_lea.vmem [#allocation16], %s2240
          %2242 = dma.done %s2238, 128
        $region112: #{tpu_custom_call.1} parent=107 // pred_fallthru
          _
      $region108: #{tpu_custom_call.1} parent=5 // pred_fallthru
        _
    $region6: #{tpu_custom_call.1} parent=1 // loop_footer
      %s32 = sadd.s32 1, %s28
    $region7: #{tpu_custom_call.1} parent=1 // loop_footer_branch
      %27 = sbr.rel target = $region3
    $region8: #{tpu_custom_call.1} parent=1 // loop_exit
      _
    %2243 = vsyncpa [#allocation3], 1
    %s2244 = scalar_lea.sflag [#allocation3], 1
    %2245 = vsyncpa %s2244, 1
    %2246 = vsyncpa [#allocation6], 1
    %2247 = vsyncpa [#allocation9], 1
    %2248 = vsyncpa [#allocation12], 1
    %2249 = vsyncpa [#allocation15], 1
    %2250 = vsyncpa [#allocation4], 1
    %s2251 = scalar_lea.sflag [#allocation4], 1
    %2252 = vsyncpa %s2251, 1

</llo_original>
